<compile_context>
chip_gen: v5e
topology: v5e:2x2
jax: 0.10.0
libtpu: 0.0.40
codegen_flags: <defaults>
</compile_context>

<pallas_src>
import jax
import jax.numpy as jnp
from jax.experimental import pallas as pl
from jax.experimental.pallas import tpu as pltpu


# ---------------------------------------------------------------------------
# Fused kernel.  grid = (batch, hw // TQ).
#   xc_ref  : (hw, c)   f32  corner-grouped x (resident across the query axis)
#   wf_ref  : (c, c8)   bf16   f weights (pre-transposed, spectrally normalized)
#   bf_ref  : (1, c8)   f32
#   wgh_ref : (c, c2+c8) bf16  fused [h | g] weights
#   bgh_ref : (1, c2+c8) f32   fused [bh | bg] biases
#   wv_ref  : (c2, c)   bf16   v weights
#   bv_ref  : (1, c)    f32
#   gamma   : (1, 1)    f32 in SMEM
#   o_ref   : (tq, c)   f32  output tile  = x + gamma * v(attention)
#   gp_ref  : (hw4, c8) bf16 scratch  pooled g   (persistent across grid steps)
#   hp_ref  : (hw4, c2) bf16 scratch  pooled h
# ---------------------------------------------------------------------------
def self_attention_kernel(xc_ref, wf_ref, bf_ref, wgh_ref, bgh_ref,
                          wv_ref, bv_ref, gamma_ref, o_ref, gp_ref, hp_ref):
    q = pl.program_id(1)
    hw = xc_ref.shape[0]
    hw4 = hw // 4
    tq = o_ref.shape[0]
    c2 = hp_ref.shape[1]

    # ---- once per batch element: fused g/h 1x1 conv + 2x2 max-pool ----------
    # x is corner-grouped: rows [k*hw4, (k+1)*hw4) hold corner k of every 2x2
    # window, so the pool is an elementwise max over 4 contiguous row chunks
    # (pure VPU, sublane-aligned since hw4 % 8 == 0).
    @pl.when(q == 0)
    def _():
        xcb = xc_ref[...].astype(jnp.bfloat16)
        gh = jnp.dot(xcb, wgh_ref[...],
                     preferred_element_type=jnp.float32)              # (hw, c2+c8)
        gh = jnp.maximum(jnp.maximum(gh[0:hw4], gh[hw4:2 * hw4]),
                         jnp.maximum(gh[2 * hw4:3 * hw4], gh[3 * hw4:4 * hw4]))
        gh = (gh + bgh_ref[...]).astype(jnp.bfloat16)  # bias after max (commutes)
        hp_ref[...] = gh[:, :c2]                                        # (hw4, c2)
        gp_ref[...] = gh[:, c2:]                                        # (hw4, c8)

    # ---- per query tile ------------------------------------------------------
    row0 = pl.multiple_of(q * tq, tq)
    xq = xc_ref[pl.ds(row0, tq), :].astype(jnp.bfloat16)                # (tq, c)

    fx = jnp.dot(xq, wf_ref[...],
                 preferred_element_type=jnp.float32) + bf_ref[...]      # (tq, c8)

    # scores: contract the channel axis of both operands (no materialized T)
    s = jax.lax.dot_general(fx.astype(jnp.bfloat16), gp_ref[...],
                            dimension_numbers=(((1,), (1,)), ((), ())),
                            preferred_element_type=jnp.float32)         # (tq, hw4)

    # softmax over the pooled axis (f32; reciprocal on the EUP)
    s = s - jnp.max(s, axis=-1, keepdims=True)
    e = jnp.exp(s)
    p = e * pl.reciprocal(jnp.sum(e, axis=-1, keepdims=True), approx=False)

    # attention @ pooled-h, output 1x1 conv v, gamma residual
    m = jnp.dot(p.astype(jnp.bfloat16), hp_ref[...],
                preferred_element_type=jnp.float32)                     # (tq, c2)
    av = jnp.dot(m.astype(jnp.bfloat16), wv_ref[...],
                 preferred_element_type=jnp.float32) + bv_ref[...]      # (tq, c)

    # residual: re-read the f32 tile here (keeps its live range short)
    o_ref[...] = xc_ref[pl.ds(row0, tq), :] + gamma_ref[0, 0] * av


def _vmem_limit_bytes(hw, hw4, tq, c, c8, c2):
    """Scoped-VMEM request sized from the actual working set (with headroom)."""
    f32, bf16 = 4, 2
    est = (
        2 * hw * c * f32                             # corner-grouped x block, double-buffered
        + 2 * tq * c * f32                           # output tile, double-buffered
        + hw4 * (c8 + c2) * bf16                     # persistent pooled g/h scratch
        + hw * (c8 + c2) * f32                       # q==0 g/h projection before pooling
        + tq * (c8 + 3 * hw4 + c2 + 2 * c) * f32     # fx, s/e/p, m, av, residual tile
        + (c * c8 + c * (c8 + c2) + c2 * c) * bf16   # weights
    )
    est = int(est * 1.5) + (4 << 20)                 # pipeline / bookkeeping headroom
    try:
        ceiling = int(pltpu.get_tpu_info().vmem_capacity_bytes * 3 // 4)
    except Exception:
        ceiling = 96 << 20                           # conservative v5e/v6e ceiling
    return max(32 << 20, min(est, ceiling))


# ---------------------------------------------------------------------------
# Wrapper
# ---------------------------------------------------------------------------
def self_attention(x, wf, bf, wg, bg, wh_, bh, wv, bv, gamma, *, tq=None):
    """x: (b, c, h, w) f32.  w*: (out_c, in_c) spectrally-normalized 1x1-conv
    weights, b*: (out_c,) biases, gamma: scalar.  Returns (b, c, h, w)."""
    b, c, h, w = x.shape
    assert c % 8 == 0 and h % 2 == 0 and w % 2 == 0
    hw = h * w
    hw4 = hw // 4
    c8, c2 = c // 8, c // 2
    # sublane alignment of the 4 corner chunks (keeps the pool pure VPU work)
    assert hw4 % 8 == 0, "(h//2)*(w//2) must be a multiple of 8"

    if tq is None:
        tq = hw
        for cand in (512, 256, 128):
            if hw > cand and hw % cand == 0:
                tq = cand
                break
    assert hw % tq == 0 and tq % 8 == 0
    nq = hw // tq

    # corner-grouped channels-last layout: 4 contiguous row chunks (one per
    # 2x2-pool-window corner), each chunk in pooled row-major (i2*(w/2)+j2)
    # order.  This is the ONLY copy of x fed to the kernel.
    x_cor = (x.reshape(b, c, h // 2, 2, w // 2, 2)
              .transpose(0, 3, 5, 2, 4, 1)
              .reshape(b, hw, c))

    # pre-transposed (in, out) bf16 weights; g/h fused as [h | g] so the
    # post-pool split lands at c/2 (lane-aligned for real SAGAN widths)
    wf_t = wf.T.astype(jnp.bfloat16)                                      # (c, c8)
    wgh_t = jnp.concatenate([wh_.T, wg.T], axis=1).astype(jnp.bfloat16)   # (c, c2+c8)
    wv_t = wv.T.astype(jnp.bfloat16)                                      # (c2, c)
    bf_r = bf.reshape(1, c8).astype(jnp.float32)
    bgh_r = jnp.concatenate([bh, bg]).reshape(1, c2 + c8).astype(jnp.float32)
    bv_r = bv.reshape(1, c).astype(jnp.float32)
    gamma_r = jnp.asarray(gamma, jnp.float32).reshape(1, 1)

    def const(shape):
        zeros = (0,) * len(shape)
        return pl.BlockSpec(shape, lambda bi, qi: zeros)

    out_cor = pl.pallas_call(
        self_attention_kernel,
        out_shape=jax.ShapeDtypeStruct((b, hw, c), jnp.float32),
        grid=(b, nq),
        in_specs=[
            # full per-batch corner-grouped x; index map ignores the query
            # axis, so the block stays resident across all query tiles.
            pl.BlockSpec((None, hw, c), lambda bi, qi: (bi, 0, 0)),
            const((c, c8)), const((1, c8)),                # f
            const((c, c2 + c8)), const((1, c2 + c8)),      # fused [h|g]
            const((c2, c)), const((1, c)),                 # v
            pl.BlockSpec(memory_space=pltpu.MemorySpace.SMEM),   # gamma
        ],
        out_specs=pl.BlockSpec((None, tq, c), lambda bi, qi: (bi, qi, 0)),
        scratch_shapes=[pltpu.VMEM((hw4, c8), jnp.bfloat16),    # pooled g
                        pltpu.VMEM((hw4, c2), jnp.bfloat16)],   # pooled h
        compiler_params=pltpu.CompilerParams(
            dimension_semantics=("parallel", "arbitrary"),
            vmem_limit_bytes=_vmem_limit_bytes(hw, hw4, tq, c, c8, c2)),
    )(x_cor, wf_t, bf_r, wgh_t, bgh_r, wv_t, bv_r, gamma_r)

    # invert the corner-grouping permutation: (b, di, dj, i2, j2, c) -> (b,c,h,w)
    out = (out_cor.reshape(b, 2, 2, h // 2, w // 2, c)
                  .transpose(0, 5, 3, 1, 4, 2)
                  .reshape(b, c, h, w))
    return out


# ---------------------------------------------------------------------------
# Pure-JAX reference mirroring the PyTorch forward exactly.
# ---------------------------------------------------------------------------
def reference(x, wf, bf, wg, bg, wh_, bh, wv, bv, gamma):
    b, c, h, w = x.shape

    def conv1x1(t, wt, bt):
        return jnp.einsum('oi,bihw->bohw', wt, t) + bt[None, :, None, None]

    def pool2x2(t):
        bb, cc, hh, ww = t.shape
        return t.reshape(bb, cc, hh // 2, 2, ww // 2, 2).max(axis=(3, 5))

    fx = conv1x1(x, wf, bf).reshape(b, c // 8, h * w).transpose(0, 2, 1)
    gx = pool2x2(conv1x1(x, wg, bg)).reshape(b, c // 8, h * w // 4)
    att = jax.nn.softmax(jnp.einsum('bqc,bck->bqk', fx, gx), axis=-1)
    hx = pool2x2(conv1x1(x, wh_, bh)).reshape(b, c // 2, h * w // 4).transpose(0, 2, 1)
    merged = jnp.einsum('bqk,bkc->bqc', att, hx).transpose(0, 2, 1).reshape(b, c // 2, h, w)
    av = conv1x1(merged, wv, bv)
    return x + av * gamma


if __name__ == "__main__":
    # Small deterministic config: in_channels must be a multiple of 8.
    batch, c, h, w = 2, 32, 16, 16          # hw=256 -> tq=128, 2 query tiles
    c8, c2 = c // 8, c // 2

    key = jax.random.PRNGKey(0)
    kx, k1, k2, k3, k4, kb1, kb2, kb3, kb4 = jax.random.split(key, 9)

    x = jax.random.normal(kx, (batch, c, h, w), dtype=jnp.float32)

    def spectral_normalize(wm):
        # exact spectral norm (what power iteration converges to)
        return wm / jnp.linalg.norm(wm, ord=2)

    def conv_init(k, out_c, in_c):
        bound = 1.0 / (in_c ** 0.5)
        return jax.random.uniform(k, (out_c, in_c), jnp.float32, -bound, bound)

    wf = spectral_normalize(conv_init(k1, c8, c))
    wg = spectral_normalize(conv_init(k2, c8, c))
    wh_ = spectral_normalize(conv_init(k3, c2, c))
    wv = spectral_normalize(conv_init(k4, c, c2))
    bf = jax.random.uniform(kb1, (c8,), jnp.float32, -0.1, 0.1)
    bg = jax.random.uniform(kb2, (c8,), jnp.float32, -0.1, 0.1)
    bh = jax.random.uniform(kb3, (c2,), jnp.float32, -0.1, 0.1)
    bv = jax.random.uniform(kb4, (c,), jnp.float32, -0.1, 0.1)
    # gamma is initialized to 0 in the module (forward would return x);
    # use a nonzero value so the attention branch is actually exercised.
    gamma = jnp.float32(0.7)

    out = self_attention(x, wf, bf, wg, bg, wh_, bh, wv, bv, gamma)
    out = jax.block_until_ready(out)

    ref = reference(x, wf, bf, wg, bg, wh_, bh, wv, bv, gamma)
    assert out.shape == (batch, c, h, w), out.shape
    max_err = float(jnp.max(jnp.abs(out - ref)))
    assert jnp.allclose(out, ref, atol=3e-2, rtol=3e-2), max_err

    print("KERNEL_OK")
</pallas_src>

<mosaic_0001>
module attributes {stable_mosaic.version = 11 : i64} {
  func.func @self_attention_kernel(%arg0: i32, %arg1: i32, %arg2: memref<1x256x32xf32, #tpu.memory_space<vmem>>, %arg3: memref<32x4xbf16, #tpu.memory_space<vmem>>, %arg4: memref<1x4xf32, #tpu.memory_space<vmem>>, %arg5: memref<32x20xbf16, #tpu.memory_space<vmem>>, %arg6: memref<1x20xf32, #tpu.memory_space<vmem>>, %arg7: memref<16x32xbf16, #tpu.memory_space<vmem>>, %arg8: memref<1x32xf32, #tpu.memory_space<vmem>>, %arg9: memref<1x1xf32, #tpu.memory_space<smem>>, %arg10: memref<1x128x32xf32, #tpu.memory_space<vmem>>, %arg11: memref<64x4xbf16, #tpu.memory_space<vmem>>, %arg12: memref<64x16xbf16, #tpu.memory_space<vmem>>) attributes {dimension_semantics = [#tpu.dimension_semantics<parallel>, #tpu.dimension_semantics<arbitrary>], iteration_bounds = array<i64: 2, 2>, scalar_prefetch = 0 : i64, scratch_operands = 2 : i64, tpu.core_type = #tpu.core_type<tc>, window_params = [{transform_indices = @transform_0, window_bounds = array<i64: 1, 256, 32>}, {pipeline_mode = #tpu.pipeline_mode<synchronous>, transform_indices = @transform_1, window_bounds = array<i64: 32, 4>}, {pipeline_mode = #tpu.pipeline_mode<synchronous>, transform_indices = @transform_2, window_bounds = array<i64: 1, 4>}, {pipeline_mode = #tpu.pipeline_mode<synchronous>, transform_indices = @transform_3, window_bounds = array<i64: 32, 20>}, {pipeline_mode = #tpu.pipeline_mode<synchronous>, transform_indices = @transform_4, window_bounds = array<i64: 1, 20>}, {pipeline_mode = #tpu.pipeline_mode<synchronous>, transform_indices = @transform_5, window_bounds = array<i64: 16, 32>}, {pipeline_mode = #tpu.pipeline_mode<synchronous>, transform_indices = @transform_6, window_bounds = array<i64: 1, 32>}, {transform_indices = @transform_7, window_bounds = array<i64: 1, 1>}, {transform_indices = @transform_8, window_bounds = array<i64: 1, 128, 32>}]} {
    %c0_i32 = arith.constant 0 : i32
    %0 = arith.cmpi eq, %arg1, %c0_i32 : i32
    %1 = arith.extui %0 : i1 to i32
    %c0_i32_0 = arith.constant 0 : i32
    %2 = arith.cmpi ne, %1, %c0_i32_0 : i32
    scf.if %2 {
      %c0_26 = arith.constant 0 : index
      %c0_27 = arith.constant 0 : index
      %c0_28 = arith.constant 0 : index
      %46 = vector.load %arg2[%c0_26, %c0_27, %c0_28] : memref<1x256x32xf32, #tpu.memory_space<vmem>>, vector<1x256x32xf32>
      %47 = vector.shape_cast %46 : vector<1x256x32xf32> to vector<256x32xf32>
      %48 = arith.truncf %47 : vector<256x32xf32> to vector<256x32xbf16>
      %c0_29 = arith.constant 0 : index
      %c0_30 = arith.constant 0 : index
      %49 = vector.load %arg5[%c0_29, %c0_30] : memref<32x20xbf16, #tpu.memory_space<vmem>>, vector<32x20xbf16>
      %cst_31 = arith.constant dense<0.000000e+00> : vector<256x20xf32>
      %50 = tpu.matmul %48, %49, %cst_31 {dimension_numbers = #tpu.dot_dimension_numbers<[1], [0], [0], [1], [0, 0, 1, 1], [], []>} : vector<256x32xbf16>, vector<32x20xbf16>, vector<256x20xf32> -> vector<256x20xf32>
      %51 = vector.extract_strided_slice %50 {offsets = [0, 0], sizes = [64, 20], strides = [1, 1]} : vector<256x20xf32> to vector<64x20xf32>
      %52 = vector.extract_strided_slice %50 {offsets = [64, 0], sizes = [64, 20], strides = [1, 1]} : vector<256x20xf32> to vector<64x20xf32>
      %53 = arith.maximumf %51, %52 : vector<64x20xf32>
      %54 = vector.extract_strided_slice %50 {offsets = [128, 0], sizes = [64, 20], strides = [1, 1]} : vector<256x20xf32> to vector<64x20xf32>
      %55 = vector.extract_strided_slice %50 {offsets = [192, 0], sizes = [64, 20], strides = [1, 1]} : vector<256x20xf32> to vector<64x20xf32>
      %56 = arith.maximumf %54, %55 : vector<64x20xf32>
      %57 = arith.maximumf %53, %56 : vector<64x20xf32>
      %c0_32 = arith.constant 0 : index
      %c0_33 = arith.constant 0 : index
      %58 = vector.load %arg6[%c0_32, %c0_33] : memref<1x20xf32, #tpu.memory_space<vmem>>, vector<1x20xf32>
      %59 = vector.broadcast %58 : vector<1x20xf32> to vector<64x20xf32>
      %60 = arith.addf %57, %59 : vector<64x20xf32>
      %61 = arith.truncf %60 : vector<64x20xf32> to vector<64x20xbf16>
      %62 = vector.extract_strided_slice %61 {offsets = [0, 0], sizes = [64, 16], strides = [1, 1]} : vector<64x20xbf16> to vector<64x16xbf16>
      %c0_34 = arith.constant 0 : index
      %c0_35 = arith.constant 0 : index
      %63 = vector.load %arg12[%c0_34, %c0_35] : memref<64x16xbf16, #tpu.memory_space<vmem>>, vector<64x16xbf16>
      tpu.vector_store %arg12[%c0_34, %c0_35], %62 {strides = array<i32>} : memref<64x16xbf16, #tpu.memory_space<vmem>>, vector<64x16xbf16>,
      %64 = vector.extract_strided_slice %61 {offsets = [0, 16], sizes = [64, 4], strides = [1, 1]} : vector<64x20xbf16> to vector<64x4xbf16>
      %c0_36 = arith.constant 0 : index
      %c0_37 = arith.constant 0 : index
      %65 = vector.load %arg11[%c0_36, %c0_37] : memref<64x4xbf16, #tpu.memory_space<vmem>>, vector<64x4xbf16>
      tpu.vector_store %arg11[%c0_36, %c0_37], %64 {strides = array<i32>} : memref<64x4xbf16, #tpu.memory_space<vmem>>, vector<64x4xbf16>,
    } else {
    }
    %c128_i32 = arith.constant 128 : i32
    %3 = arith.muli %arg1, %c128_i32 : i32
    %4 = tpu.assume_multiple %3, 128 : i32
    %c0 = arith.constant 0 : index
    %5 = arith.index_cast %4 : i32 to index
    %c0_1 = arith.constant 0 : index
    %6 = vector.load %arg2[%c0, %5, %c0_1] : memref<1x256x32xf32, #tpu.memory_space<vmem>>, vector<1x128x32xf32>
    %7 = vector.shape_cast %6 : vector<1x128x32xf32> to vector<128x32xf32>
    %8 = arith.truncf %7 : vector<128x32xf32> to vector<128x32xbf16>
    %c0_2 = arith.constant 0 : index
    %c0_3 = arith.constant 0 : index
    %9 = vector.load %arg3[%c0_2, %c0_3] : memref<32x4xbf16, #tpu.memory_space<vmem>>, vector<32x4xbf16>
    %cst = arith.constant dense<0.000000e+00> : vector<128x4xf32>
    %10 = tpu.matmul %8, %9, %cst {dimension_numbers = #tpu.dot_dimension_numbers<[1], [0], [0], [1], [0, 0, 1, 1], [], []>} : vector<128x32xbf16>, vector<32x4xbf16>, vector<128x4xf32> -> vector<128x4xf32>
    %c0_4 = arith.constant 0 : index
    %c0_5 = arith.constant 0 : index
    %11 = vector.load %arg4[%c0_4, %c0_5] : memref<1x4xf32, #tpu.memory_space<vmem>>, vector<1x4xf32>
    %12 = vector.broadcast %11 : vector<1x4xf32> to vector<128x4xf32>
    %13 = arith.addf %10, %12 : vector<128x4xf32>
    %14 = arith.truncf %13 : vector<128x4xf32> to vector<128x4xbf16>
    %c0_6 = arith.constant 0 : index
    %c0_7 = arith.constant 0 : index
    %15 = vector.load %arg11[%c0_6, %c0_7] : memref<64x4xbf16, #tpu.memory_space<vmem>>, vector<64x4xbf16>
    %cst_8 = arith.constant dense<0.000000e+00> : vector<128x64xf32>
    %16 = tpu.matmul %14, %15, %cst_8 {dimension_numbers = #tpu.dot_dimension_numbers<[1], [1], [0], [0], [0, 0, 1, 0], [], []>} : vector<128x4xbf16>, vector<64x4xbf16>, vector<128x64xf32> -> vector<128x64xf32>
    %cst_9 = arith.constant dense<0xFF800000> : vector<128xf32>
    %17 = vector.multi_reduction <maximumf>, %16, %cst_9 [1] : vector<128x64xf32> to vector<128xf32>
    %18 = vector.shape_cast %17 : vector<128xf32> to vector<128x1xf32>
    %19 = vector.broadcast %18 : vector<128x1xf32> to vector<128x64xf32>
    %20 = arith.subf %16, %19 : vector<128x64xf32>
    %21 = math.exp %20 : vector<128x64xf32>
    %cst_10 = arith.constant dense<0.000000e+00> : vector<128xf32>
    %22 = vector.multi_reduction <add>, %21, %cst_10 [1] : vector<128x64xf32> to vector<128xf32>
    %23 = vector.shape_cast %22 : vector<128xf32> to vector<128x1xf32>
    %24 = tpu.reciprocal %23 : vector<128x1xf32> -> vector<128x1xf32>
    %25 = vector.broadcast %24 : vector<128x1xf32> to vector<128x64xf32>
    %26 = arith.mulf %21, %25 : vector<128x64xf32>
    %27 = arith.truncf %26 : vector<128x64xf32> to vector<128x64xbf16>
    %c0_11 = arith.constant 0 : index
    %c0_12 = arith.constant 0 : index
    %28 = vector.load %arg12[%c0_11, %c0_12] : memref<64x16xbf16, #tpu.memory_space<vmem>>, vector<64x16xbf16>
    %cst_13 = arith.constant dense<0.000000e+00> : vector<128x16xf32>
    %29 = tpu.matmul %27, %28, %cst_13 {dimension_numbers = #tpu.dot_dimension_numbers<[1], [0], [0], [1], [0, 0, 1, 1], [], []>} : vector<128x64xbf16>, vector<64x16xbf16>, vector<128x16xf32> -> vector<128x16xf32>
    %30 = arith.truncf %29 : vector<128x16xf32> to vector<128x16xbf16>
    %c0_14 = arith.constant 0 : index
    %c0_15 = arith.constant 0 : index
    %31 = vector.load %arg7[%c0_14, %c0_15] : memref<16x32xbf16, #tpu.memory_space<vmem>>, vector<16x32xbf16>
    %cst_16 = arith.constant dense<0.000000e+00> : vector<128x32xf32>
    %32 = tpu.matmul %30, %31, %cst_16 {dimension_numbers = #tpu.dot_dimension_numbers<[1], [0], [0], [1], [0, 0, 1, 1], [], []>} : vector<128x16xbf16>, vector<16x32xbf16>, vector<128x32xf32> -> vector<128x32xf32>
    %c0_17 = arith.constant 0 : index
    %c0_18 = arith.constant 0 : index
    %33 = vector.load %arg8[%c0_17, %c0_18] : memref<1x32xf32, #tpu.memory_space<vmem>>, vector<1x32xf32>
    %34 = vector.broadcast %33 : vector<1x32xf32> to vector<128x32xf32>
    %35 = arith.addf %32, %34 : vector<128x32xf32>
    %c0_19 = arith.constant 0 : index
    %36 = arith.index_cast %4 : i32 to index
    %c0_20 = arith.constant 0 : index
    %37 = vector.load %arg2[%c0_19, %36, %c0_20] : memref<1x256x32xf32, #tpu.memory_space<vmem>>, vector<1x128x32xf32>
    %38 = vector.shape_cast %37 : vector<1x128x32xf32> to vector<128x32xf32>
    %c0_21 = arith.constant 0 : index
    %c0_22 = arith.constant 0 : index
    %39 = memref.load %arg9[%c0_21, %c0_22] : memref<1x1xf32, #tpu.memory_space<smem>>
    %40 = vector.broadcast %39 : f32 to vector<128x32xf32>
    %41 = arith.mulf %40, %35 : vector<128x32xf32>
    %42 = arith.addf %38, %41 : vector<128x32xf32>
    %c0_23 = arith.constant 0 : index
    %c0_24 = arith.constant 0 : index
    %c0_25 = arith.constant 0 : index
    %43 = vector.load %arg10[%c0_23, %c0_24, %c0_25] : memref<1x128x32xf32, #tpu.memory_space<vmem>>, vector<1x128x32xf32>
    %44 = vector.shape_cast %43 : vector<1x128x32xf32> to vector<128x32xf32>
    %45 = vector.shape_cast %42 : vector<128x32xf32> to vector<1x128x32xf32>
    tpu.vector_store %arg10[%c0_23, %c0_24, %c0_25], %45 {strides = array<i32>} : memref<1x128x32xf32, #tpu.memory_space<vmem>>, vector<1x128x32xf32>,
    return
  }
  func.func @transform_0(%arg0: i32, %arg1: i32) -> (i32, i32, i32) {
    %c0_i32 = arith.constant 0 : i32
    %c0_i32_0 = arith.constant 0 : i32
    %c0_i32_1 = arith.constant 0 : i32
    return %arg0, %c0_i32, %c0_i32_0 : i32, i32, i32
  }
  func.func @transform_1(%arg0: i32, %arg1: i32) -> (i32, i32) {
    %c0_i32 = arith.constant 0 : i32
    %c0_i32_0 = arith.constant 0 : i32
    %c0_i32_1 = arith.constant 0 : i32
    return %c0_i32, %c0_i32_0 : i32, i32
  }
  func.func @transform_2(%arg0: i32, %arg1: i32) -> (i32, i32) {
    %c0_i32 = arith.constant 0 : i32
    %c0_i32_0 = arith.constant 0 : i32
    %c0_i32_1 = arith.constant 0 : i32
    return %c0_i32, %c0_i32_0 : i32, i32
  }
  func.func @transform_3(%arg0: i32, %arg1: i32) -> (i32, i32) {
    %c0_i32 = arith.constant 0 : i32
    %c0_i32_0 = arith.constant 0 : i32
    %c0_i32_1 = arith.constant 0 : i32
    return %c0_i32, %c0_i32_0 : i32, i32
  }
  func.func @transform_4(%arg0: i32, %arg1: i32) -> (i32, i32) {
    %c0_i32 = arith.constant 0 : i32
    %c0_i32_0 = arith.constant 0 : i32
    %c0_i32_1 = arith.constant 0 : i32
    return %c0_i32, %c0_i32_0 : i32, i32
  }
  func.func @transform_5(%arg0: i32, %arg1: i32) -> (i32, i32) {
    %c0_i32 = arith.constant 0 : i32
    %c0_i32_0 = arith.constant 0 : i32
    %c0_i32_1 = arith.constant 0 : i32
    return %c0_i32, %c0_i32_0 : i32, i32
  }
  func.func @transform_6(%arg0: i32, %arg1: i32) -> (i32, i32) {
    %c0_i32 = arith.constant 0 : i32
    %c0_i32_0 = arith.constant 0 : i32
    %c0_i32_1 = arith.constant 0 : i32
    return %c0_i32, %c0_i32_0 : i32, i32
  }
  func.func @transform_7(%arg0: i32, %arg1: i32) -> (i32, i32) {
    %c0_i32 = arith.constant 0 : i32
    %c0_i32_0 = arith.constant 0 : i32
    %c0_i32_1 = arith.constant 0 : i32
    return %c0_i32, %c0_i32_0 : i32, i32
  }
  func.func @transform_8(%arg0: i32, %arg1: i32) -> (i32, i32, i32) {
    %c0_i32 = arith.constant 0 : i32
    %c0_i32_0 = arith.constant 0 : i32
    return %arg0, %arg1, %c0_i32 : i32, i32, i32
  }
}

</mosaic_0001>

<llo_original>
// kernel: tpu_custom_call.1
$region0: #{tpu_custom_call.1}
  #allocation0 [shape = 'u32[]', space=smem, size = 0x4, offset = 0x4, fixed_abs, tag = 'smem constant byte address 0x4 - core index']
  #allocation1 [shape = 'u32[72,128]{1,0:T(1,128)}', space=vmem, size = 0x9000, scoped, tag = 'internal scratch']
  #allocation2 [shape = 'bf16[64,4]{1,0:T(8,128)(2,1)}', space=vmem, size = 0x4000, scoped, tag = 'scratch operand']
  #allocation3 [shape = 'bf16[64,16]{1,0:T(8,128)(2,1)}', space=vmem, size = 0x4000, scoped, tag = 'scratch operand']
  #allocation4 [shape = 'f32[1,1]{1,0:T(1,128)S(6)}', space=smem, size = 0x200, scoped, tag = 'scoped memory for tpu_custom_call.1']
  %s0 = inlined_call_operand.vmem [shape: f32[2,256,32], index: 0, kind: input, shape index: {}]
  %s1 = inlined_call_operand.vmem [shape: bf16[32,4], index: 1, kind: input, shape index: {}]
  %s2 = inlined_call_operand.vmem [shape: f32[1,4], index: 2, kind: input, shape index: {}]
  %s3 = inlined_call_operand.vmem [shape: bf16[32,20], index: 3, kind: input, shape index: {}]
  %s4 = inlined_call_operand.vmem [shape: f32[1,20], index: 4, kind: input, shape index: {}]
  %s5 = inlined_call_operand.vmem [shape: bf16[16,32], index: 5, kind: input, shape index: {}]
  %s6 = inlined_call_operand.vmem [shape: f32[1,32], index: 6, kind: input, shape index: {}]
  %s7 = inlined_call_operand.<no memory space> [shape: f32[1,1], index: 7, kind: input, shape index: {}]
  %s8 = inlined_call_operand.vmem [shape: f32[2,256,32], index: 8, kind: output, shape index: {}]
  %s9 = sld [smem:[#allocation0]]
  $region69: #{tpu_custom_call.1} parent=0
    _
  %s11 = ssub.s32 1, %s9
  %s12 = scalar_select 0, %s11, %s9
  %13 = sst [smem:[#allocation4]] %s7
  loop: start=0, step=1, limit=6
  $region2: #{tpu_custom_call.1} parent=0 // loop_pre_header
    _
  $region3: #{tpu_custom_call.1} parent=0 // loop_header
    %s15 = sphi 0, %s19
    %p16 = scmp.ge.s32.totalorder %s15, 6
    %s22 = sphi 0, %s34
    %s23 = sphi 0, %s30
    %s24 = sphi 0, %s22
    %s25 = sphi 0, %s23
    %s26 = sphi 0, %s24
    %s27 = sphi 0, %s25
    %s37 = sphi 0, %s39
    %s40 = sphi 0, %s37
    %s41 = sphi 0, %s40
    %s57 = sphi 0, %s41
    %s61 = sphi 0, %s61
    %s63 = sphi 0, %s61
    %s64 = sphi 0, %s63
    %s78 = sphi 0, %s64
    %s82 = sphi 0, %s82
    %s84 = sphi 0, %s82
    %s85 = sphi 0, %s84
    %s99 = sphi 0, %s85
    %s103 = sphi 0, %s103
    %s105 = sphi 0, %s103
    %s106 = sphi 0, %s105
    %s120 = sphi 0, %s106
    %s124 = sphi 0, %s124
    %s126 = sphi 0, %s124
    %s127 = sphi 0, %s126
    %s141 = sphi 0, %s127
    %s145 = sphi 0, %s145
    %s147 = sphi 0, %s145
    %s148 = sphi 0, %s147
    %s162 = sphi 0, %s148
    %s166 = sphi 0, %s166
    %s168 = sphi 0, %s166
    %s169 = sphi 0, %s168
    %s183 = sphi 0, %s169
    %s187 = sphi 0, %s187
    %s189 = sphi 0, %s187
    %s190 = sphi 0, %s189
    %s204 = sphi 0, %s190
    %s212 = sphi 0, %s214
    %s215 = sphi 0, %s212
    %s216 = sphi 0, %s215
    %s232 = sphi 0, %s216
  $region4: #{tpu_custom_call.1} parent=0 // loop_header_branch
    %18 = sbr.rel (%p16) target = $region8
  $region5: #{tpu_custom_call.1} parent=0 // loop_body
    %s20 = ssub.s32 %s15, 1
    %s21 = ssub.s32 %s15, 2
    %s28 = sadd.s32 1, %s23
    %p29 = scmp.ge.s32.totalorder %s28, 2
    %s30 = scalar_select %p29, 0, %s28
    %s31 = sadd.s32 1, %s22
    %s32 = scalar_select %p29, %s31, %s22
    %p33 = scmp.ge.s32.totalorder %s32, 2
    %s34 = scalar_select %p33, 0, %s32
    %s35 = ssub.s32 %s22, %s34
    %p36 = scmp.eq.s32.totalorder %s35, 0
    %s38 = sadd.s32 %s37, 1
    %s39 = scalar_select %p36, %s37, %s38
    %p42 = pneg %p36
    %p43 = scmp.eq.s32.totalorder %s15, 3
    %p44 = por %p42, %p43
    %p45 = scmp.ne.s32.totalorder %s37, %s40
    %p46 = scmp.eq.s32.totalorder %s15, 0
    %p47 = por %p45, %p46
    %p48 = scmp.ne.s32.totalorder %s37, %s40
    %p49 = scmp.eq.s32.totalorder %s20, 3
    %p50 = por %p48, %p49
    %p51 = scmp.ne.s32.totalorder %s40, %s41
    %p52 = scmp.eq.s32.totalorder %s20, 0
    %p53 = por %p51, %p52
    %p54 = scmp.ne.s32.totalorder %s40, %s41
    %p55 = scmp.eq.s32.totalorder %s21, 3
    %p56 = por %p54, %p55
    %p58 = scmp.ne.s32.totalorder %s41, %s57
    %p59 = scmp.eq.s32.totalorder %s21, 0
    %p60 = por %p58, %p59
    %s62 = sadd.s32 %s61, 1
    %p65 = scmp.eq.s32.totalorder %s15, 3
    %p66 = scmp.ne.s32.totalorder %s61, %s63
    %p67 = scmp.eq.s32.totalorder %s15, 0
    %p68 = por %p66, %p67
    %p69 = scmp.ne.s32.totalorder %s61, %s63
    %p70 = scmp.eq.s32.totalorder %s20, 3
    %p71 = por %p69, %p70
    %p72 = scmp.ne.s32.totalorder %s63, %s64
    %p73 = scmp.eq.s32.totalorder %s20, 0
    %p74 = por %p72, %p73
    %p75 = scmp.ne.s32.totalorder %s63, %s64
    %p76 = scmp.eq.s32.totalorder %s21, 3
    %p77 = por %p75, %p76
    %p79 = scmp.ne.s32.totalorder %s64, %s78
    %p80 = scmp.eq.s32.totalorder %s21, 0
    %p81 = por %p79, %p80
    %s83 = sadd.s32 %s82, 1
    %p86 = scmp.eq.s32.totalorder %s15, 3
    %p87 = scmp.ne.s32.totalorder %s82, %s84
    %p88 = scmp.eq.s32.totalorder %s15, 0
    %p89 = por %p87, %p88
    %p90 = scmp.ne.s32.totalorder %s82, %s84
    %p91 = scmp.eq.s32.totalorder %s20, 3
    %p92 = por %p90, %p91
    %p93 = scmp.ne.s32.totalorder %s84, %s85
    %p94 = scmp.eq.s32.totalorder %s20, 0
    %p95 = por %p93, %p94
    %p96 = scmp.ne.s32.totalorder %s84, %s85
    %p97 = scmp.eq.s32.totalorder %s21, 3
    %p98 = por %p96, %p97
    %p100 = scmp.ne.s32.totalorder %s85, %s99
    %p101 = scmp.eq.s32.totalorder %s21, 0
    %p102 = por %p100, %p101
    %s104 = sadd.s32 %s103, 1
    %p107 = scmp.eq.s32.totalorder %s15, 3
    %p108 = scmp.ne.s32.totalorder %s103, %s105
    %p109 = scmp.eq.s32.totalorder %s15, 0
    %p110 = por %p108, %p109
    %p111 = scmp.ne.s32.totalorder %s103, %s105
    %p112 = scmp.eq.s32.totalorder %s20, 3
    %p113 = por %p111, %p112
    %p114 = scmp.ne.s32.totalorder %s105, %s106
    %p115 = scmp.eq.s32.totalorder %s20, 0
    %p116 = por %p114, %p115
    %p117 = scmp.ne.s32.totalorder %s105, %s106
    %p118 = scmp.eq.s32.totalorder %s21, 3
    %p119 = por %p117, %p118
    %p121 = scmp.ne.s32.totalorder %s106, %s120
    %p122 = scmp.eq.s32.totalorder %s21, 0
    %p123 = por %p121, %p122
    %s125 = sadd.s32 %s124, 1
    %p128 = scmp.eq.s32.totalorder %s15, 3
    %p129 = scmp.ne.s32.totalorder %s124, %s126
    %p130 = scmp.eq.s32.totalorder %s15, 0
    %p131 = por %p129, %p130
    %p132 = scmp.ne.s32.totalorder %s124, %s126
    %p133 = scmp.eq.s32.totalorder %s20, 3
    %p134 = por %p132, %p133
    %p135 = scmp.ne.s32.totalorder %s126, %s127
    %p136 = scmp.eq.s32.totalorder %s20, 0
    %p137 = por %p135, %p136
    %p138 = scmp.ne.s32.totalorder %s126, %s127
    %p139 = scmp.eq.s32.totalorder %s21, 3
    %p140 = por %p138, %p139
    %p142 = scmp.ne.s32.totalorder %s127, %s141
    %p143 = scmp.eq.s32.totalorder %s21, 0
    %p144 = por %p142, %p143
    %s146 = sadd.s32 %s145, 1
    %p149 = scmp.eq.s32.totalorder %s15, 3
    %p150 = scmp.ne.s32.totalorder %s145, %s147
    %p151 = scmp.eq.s32.totalorder %s15, 0
    %p152 = por %p150, %p151
    %p153 = scmp.ne.s32.totalorder %s145, %s147
    %p154 = scmp.eq.s32.totalorder %s20, 3
    %p155 = por %p153, %p154
    %p156 = scmp.ne.s32.totalorder %s147, %s148
    %p157 = scmp.eq.s32.totalorder %s20, 0
    %p158 = por %p156, %p157
    %p159 = scmp.ne.s32.totalorder %s147, %s148
    %p160 = scmp.eq.s32.totalorder %s21, 3
    %p161 = por %p159, %p160
    %p163 = scmp.ne.s32.totalorder %s148, %s162
    %p164 = scmp.eq.s32.totalorder %s21, 0
    %p165 = por %p163, %p164
    %s167 = sadd.s32 %s166, 1
    %p170 = scmp.eq.s32.totalorder %s15, 3
    %p171 = scmp.ne.s32.totalorder %s166, %s168
    %p172 = scmp.eq.s32.totalorder %s15, 0
    %p173 = por %p171, %p172
    %p174 = scmp.ne.s32.totalorder %s166, %s168
    %p175 = scmp.eq.s32.totalorder %s20, 3
    %p176 = por %p174, %p175
    %p177 = scmp.ne.s32.totalorder %s168, %s169
    %p178 = scmp.eq.s32.totalorder %s20, 0
    %p179 = por %p177, %p178
    %p180 = scmp.ne.s32.totalorder %s168, %s169
    %p181 = scmp.eq.s32.totalorder %s21, 3
    %p182 = por %p180, %p181
    %p184 = scmp.ne.s32.totalorder %s169, %s183
    %p185 = scmp.eq.s32.totalorder %s21, 0
    %p186 = por %p184, %p185
    %s188 = sadd.s32 %s187, 1
    %p191 = scmp.eq.s32.totalorder %s15, 3
    %p192 = scmp.ne.s32.totalorder %s187, %s189
    %p193 = scmp.eq.s32.totalorder %s15, 0
    %p194 = por %p192, %p193
    %p195 = scmp.ne.s32.totalorder %s187, %s189
    %p196 = scmp.eq.s32.totalorder %s20, 3
    %p197 = por %p195, %p196
    %p198 = scmp.ne.s32.totalorder %s189, %s190
    %p199 = scmp.eq.s32.totalorder %s20, 0
    %p200 = por %p198, %p199
    %p201 = scmp.ne.s32.totalorder %s189, %s190
    %p202 = scmp.eq.s32.totalorder %s21, 3
    %p203 = por %p201, %p202
    %p205 = scmp.ne.s32.totalorder %s190, %s204
    %p206 = scmp.eq.s32.totalorder %s21, 0
    %p207 = por %p205, %p206
    %s208 = ssub.s32 %s22, %s34
    %s209 = ssub.s32 %s23, %s30
    %s210 = sor.u32 %s208, %s209
    %p211 = scmp.eq.s32.totalorder %s210, 0
    %s213 = sadd.s32 %s212, 1
    %s214 = scalar_select %p211, %s212, %s213
    %p217 = pneg %p211
    %p218 = scmp.eq.s32.totalorder %s15, 3
    %p219 = por %p217, %p218
    %p220 = scmp.ne.s32.totalorder %s212, %s215
    %p221 = scmp.eq.s32.totalorder %s15, 0
    %p222 = por %p220, %p221
    %p223 = scmp.ne.s32.totalorder %s212, %s215
    %p224 = scmp.eq.s32.totalorder %s20, 3
    %p225 = por %p223, %p224
    %p226 = scmp.ne.s32.totalorder %s215, %s216
    %p227 = scmp.eq.s32.totalorder %s20, 0
    %p228 = por %p226, %p227
    %p229 = scmp.ne.s32.totalorder %s215, %s216
    %p230 = scmp.eq.s32.totalorder %s21, 3
    %p231 = por %p229, %p230
    %p233 = scmp.ne.s32.totalorder %s216, %s232
    %p234 = scmp.eq.s32.totalorder %s21, 0
    %p235 = por %p233, %p234
    %p236 = scmp.le.s32.totalorder 1, %s15
    %p237 = scmp.lt.s32.totalorder %s15, 5
    %p238 = pnand %p236, %p237
    %p239 = pneg %p238
    // Predicated region
    $region9: #{tpu_custom_call.1} parent=5 // pred_check
      _
    $region10: #{tpu_custom_call.1} parent=5 // pred_check_branch
      %241 = sbr.rel (%p238) target = $region12
    $region11: #{tpu_custom_call.1} parent=5 // pred_region
      %s242 = ssub.s32 %s15, 1
      // Predicated region
      $region13: #{tpu_custom_call.1} parent=11 // pred_check
        %p243 = pneg %p74
      $region14: #{tpu_custom_call.1} parent=11 // pred_check_branch
        %245 = sbr.rel (%p243) target = $region16
      $region15: #{tpu_custom_call.1} parent=11 // pred_region
        _
      $region16: #{tpu_custom_call.1} parent=11 // pred_fallthru
        _
      // Predicated region
      $region17: #{tpu_custom_call.1} parent=11 // pred_check
        %p246 = pneg %p95
      $region18: #{tpu_custom_call.1} parent=11 // pred_check_branch
        %248 = sbr.rel (%p246) target = $region20
      $region19: #{tpu_custom_call.1} parent=11 // pred_region
        _
      $region20: #{tpu_custom_call.1} parent=11 // pred_fallthru
        _
      // Predicated region
      $region21: #{tpu_custom_call.1} parent=11 // pred_check
        %p249 = pneg %p116
      $region22: #{tpu_custom_call.1} parent=11 // pred_check_branch
        %251 = sbr.rel (%p249) target = $region24
      $region23: #{tpu_custom_call.1} parent=11 // pred_region
        _
      $region24: #{tpu_custom_call.1} parent=11 // pred_fallthru
        _
      // Predicated region
      $region25: #{tpu_custom_call.1} parent=11 // pred_check
        %p252 = pneg %p137
      $region26: #{tpu_custom_call.1} parent=11 // pred_check_branch
        %254 = sbr.rel (%p252) target = $region28
      $region27: #{tpu_custom_call.1} parent=11 // pred_region
        _
      $region28: #{tpu_custom_call.1} parent=11 // pred_fallthru
        _
      // Predicated region
      $region29: #{tpu_custom_call.1} parent=11 // pred_check
        %p255 = pneg %p158
      $region30: #{tpu_custom_call.1} parent=11 // pred_check_branch
        %257 = sbr.rel (%p255) target = $region32
      $region31: #{tpu_custom_call.1} parent=11 // pred_region
        _
      $region32: #{tpu_custom_call.1} parent=11 // pred_fallthru
        _
      // Predicated region
      $region33: #{tpu_custom_call.1} parent=11 // pred_check
        %p258 = pneg %p179
      $region34: #{tpu_custom_call.1} parent=11 // pred_check_branch
        %260 = sbr.rel (%p258) target = $region36
      $region35: #{tpu_custom_call.1} parent=11 // pred_region
        _
      $region36: #{tpu_custom_call.1} parent=11 // pred_fallthru
        _
      // Predicated region
      $region37: #{tpu_custom_call.1} parent=11 // pred_check
        %p261 = pneg %p200
      $region38: #{tpu_custom_call.1} parent=11 // pred_check_branch
        %263 = sbr.rel (%p261) target = $region40
      $region39: #{tpu_custom_call.1} parent=11 // pred_region
        _
      $region40: #{tpu_custom_call.1} parent=11 // pred_fallthru
        _
    $region12: #{tpu_custom_call.1} parent=5 // pred_fallthru
      _
    %p264 = scmp.lt.s32.totalorder %s15, 4
    // Predicated region
    $region41: #{tpu_custom_call.1} parent=5 // pred_check
      %p265 = pneg %p264
    $region42: #{tpu_custom_call.1} parent=5 // pred_check_branch
      %267 = sbr.rel (%p265) target = $region44
    $region43: #{tpu_custom_call.1} parent=5 // pred_region
      // Predicated region
      $region45: #{tpu_custom_call.1} parent=43 // pred_check
        %p268 = pneg %p47
      $region46: #{tpu_custom_call.1} parent=43 // pred_check_branch
        %270 = sbr.rel (%p268) target = $region48
      $region47: #{tpu_custom_call.1} parent=43 // pred_region
        %p271 = scmp.lt.s32.totalorder %s22, 1
        %s272 = scalar_select %p271, %s22, 1
        %s273 = smul.addr %s272, 32
        %s274 = smul.addr %s273, 8
        %s275 = scalar_lea.vmem %s0, %s274
      $region48: #{tpu_custom_call.1} parent=43 // pred_fallthru
        _
    $region44: #{tpu_custom_call.1} parent=5 // pred_fallthru
      _
    %p276 = scmp.le.s32.totalorder 1, %s15
    %p277 = scmp.lt.s32.totalorder %s15, 5
    %p278 = pnand %p276, %p277
    %p279 = pneg %p278
    // Predicated region
    $region49: #{tpu_custom_call.1} parent=5 // pred_check
      _
    $region50: #{tpu_custom_call.1} parent=5 // pred_check_branch
      %281 = sbr.rel (%p278) target = $region52
    $region51: #{tpu_custom_call.1} parent=5 // pred_region
      %s282 = ssub.s32 %s15, 1
      %p283 = scmp.lt.s32.totalorder %s24, 1
      %s284 = scalar_select %p283, %s24, 1
      %s285 = smul.addr %s284, 32
      %s286 = smul.addr %s285, 8
      %s287 = scalar_lea.vmem %s0, %s286
      %p288 = pneg %p53
      %p289 = pneg %p50
      %p290 = pneg %p74
      %p291 = pneg %p71
      %p292 = pneg %p95
      %p293 = pneg %p92
      %p294 = pneg %p116
      %p295 = pneg %p113
      %p296 = pneg %p137
      %p297 = pneg %p134
      %p298 = pneg %p158
      %p299 = pneg %p155
      %p300 = pneg %p179
      %p301 = pneg %p176
      %p302 = pneg %p200
      %p303 = pneg %p197
      %p304 = pneg %p228
      %p305 = pneg %p225
      %s306 = smul.u32 16, %s25
      %p307 = scmp.lt.s32.totalorder %s24, 1
      %s308 = scalar_select %p307, %s24, 1
      %p309 = scmp.lt.s32.totalorder %s306, 31
      %s310 = scalar_select %p309, %s306, 31
      %s311 = smul.addr %s308, 32
      %s312 = sadd.s32 %s310, %s311
      %s313 = smul.addr %s312, 8
      %s314 = scalar_lea.vmem %s8, %s313
      %p315 = scmp.lt.s32.totalorder %s24, 1
      %s316 = scalar_select %p315, %s24, 1
      %s317 = smul.addr %s316, 32
      %s318 = smul.addr %s317, 8
      %s319 = scalar_lea.vmem %s0, %s318
      %s320 = smul.u32 16, %s25
      %p321 = scmp.lt.s32.totalorder %s24, 1
      %s322 = scalar_select %p321, %s24, 1
      %p323 = scmp.lt.s32.totalorder %s320, 31
      %s324 = scalar_select %p323, %s320, 31
      %s325 = smul.addr %s322, 32
      %s326 = sadd.s32 %s324, %s325
      %s327 = smul.addr %s326, 8
      %s328 = scalar_lea.vmem %s8, %s327
      %s329 = smul.u32 16, %s25
      %p331 = scmp.eq.s32.totalorder %s25, 0
      // Predicated region
      $region53: #{tpu_custom_call.1} parent=51 // pred_check
        %p332 = pneg %p331
      $region54: #{tpu_custom_call.1} parent=51 // pred_check_branch
        %334 = sbr.rel (%p332) target = $region56
      $region55: #{tpu_custom_call.1} parent=51 // pred_region
        %v335 = vld [vmem:[%s319] sm:$0xff]
        %v336 = vld [vmem:[%s319 + $0x8] sm:$0xff]
        %v337 = vld [vmem:[%s319 + $0x10] sm:$0xff]
        %v338 = vld [vmem:[%s319 + $0x18] sm:$0xff]
        %v339 = vld [vmem:[%s319 + $0x20] sm:$0xff]
        %v340 = vld [vmem:[%s319 + $0x28] sm:$0xff]
        %v341 = vld [vmem:[%s319 + $0x30] sm:$0xff]
        %v342 = vld [vmem:[%s319 + $0x38] sm:$0xff]
        %v343 = vld [vmem:[%s319 + $0x40] sm:$0xff]
        %v344 = vld [vmem:[%s319 + $0x48] sm:$0xff]
        %v345 = vld [vmem:[%s319 + $0x50] sm:$0xff]
        %v346 = vld [vmem:[%s319 + $0x58] sm:$0xff]
        %v347 = vld [vmem:[%s319 + $0x60] sm:$0xff]
        %v348 = vld [vmem:[%s319 + $0x68] sm:$0xff]
        %v349 = vld [vmem:[%s319 + $0x70] sm:$0xff]
        %v350 = vld [vmem:[%s319 + $0x78] sm:$0xff]
        %v351 = vld [vmem:[%s319 + $0x80] sm:$0xff]
        %v352 = vld [vmem:[%s319 + $0x88] sm:$0xff]
        %v353 = vld [vmem:[%s319 + $0x90] sm:$0xff]
        %v354 = vld [vmem:[%s319 + $0x98] sm:$0xff]
        %v355 = vld [vmem:[%s319 + $0xa0] sm:$0xff]
        %v356 = vld [vmem:[%s319 + $0xa8] sm:$0xff]
        %v357 = vld [vmem:[%s319 + $0xb0] sm:$0xff]
        %v358 = vld [vmem:[%s319 + $0xb8] sm:$0xff]
        %v359 = vld [vmem:[%s319 + $0xc0] sm:$0xff]
        %v360 = vld [vmem:[%s319 + $0xc8] sm:$0xff]
        %v361 = vld [vmem:[%s319 + $0xd0] sm:$0xff]
        %v362 = vld [vmem:[%s319 + $0xd8] sm:$0xff]
        %v363 = vld [vmem:[%s319 + $0xe0] sm:$0xff]
        %v364 = vld [vmem:[%s319 + $0xe8] sm:$0xff]
        %v365 = vld [vmem:[%s319 + $0xf0] sm:$0xff]
        %v366 = vld [vmem:[%s319 + $0xf8] sm:$0xff]
        %v367 = vpack.c.bf16 %v336, %v335
        %v368 = vpack.c.bf16 %v338, %v337
        %v369 = vpack.c.bf16 %v340, %v339
        %v370 = vpack.c.bf16 %v342, %v341
        %v371 = vpack.c.bf16 %v344, %v343
        %v372 = vpack.c.bf16 %v346, %v345
        %v373 = vpack.c.bf16 %v348, %v347
        %v374 = vpack.c.bf16 %v350, %v349
        %v375 = vpack.c.bf16 %v352, %v351
        %v376 = vpack.c.bf16 %v354, %v353
        %v377 = vpack.c.bf16 %v356, %v355
        %v378 = vpack.c.bf16 %v358, %v357
        %v379 = vpack.c.bf16 %v360, %v359
        %v380 = vpack.c.bf16 %v362, %v361
        %v381 = vpack.c.bf16 %v364, %v363
        %v382 = vpack.c.bf16 %v366, %v365
        %v383 = vld [vmem:[%s3] sm:$0xf]
        %v384 = vld [vmem:[%s3 + $0x4] sm:$0xf]
        %v385 = vld [vmem:[%s3 + $0x8] sm:$0xf]
        %v386 = vld [vmem:[%s3 + $0xc] sm:$0xf]
        %v391 = vunpack.c.l.b16 %v383
        %v392 = vunpack.c.l.b16 %v384
        %v393 = vunpack.c.l.b16 %v385
        %v394 = vunpack.c.l.b16 %v386
        %v395 = vpack.c.b16 %v392, %v391
        %v396 = vpack.c.b16 %v394, %v393
        %vm399 = vcmask 261120
        %v401 = vsel %vm399, %v367, 0
        %v404 = vsel %vm399, %v368, 0
        %v407 = vsel %vm399, %v369, 0
        %v410 = vsel %vm399, %v370, 0
        %v413 = vsel %vm399, %v371, 0
        %v416 = vsel %vm399, %v372, 0
        %v419 = vsel %vm399, %v373, 0
        %v422 = vsel %vm399, %v374, 0
        %v425 = vsel %vm399, %v375, 0
        %v428 = vsel %vm399, %v376, 0
        %v431 = vsel %vm399, %v377, 0
        %v434 = vsel %vm399, %v378, 0
        %v437 = vsel %vm399, %v379, 0
        %v440 = vsel %vm399, %v380, 0
        %v443 = vsel %vm399, %v381, 0
        %v446 = vsel %vm399, %v382, 0
        %448 = vmatpush.bf16.msra.mxu0 0
        %449 = vmatpush.bf16.msra.mxu0 0
        %450 = vmatpush.bf16.msra.mxu0 0
        %451 = vmatpush.bf16.msra.mxu0 0
        %452 = vmatpush.bf16.msra.mxu0 0
        %453 = vmatpush.bf16.msra.mxu0 0
        %454 = vmatpush.bf16.msra.mxu0 %v396
        %455 = vmatpush.bf16.msra.mxu0 %v395
        %456 = vmatmul.bf16.gmra.mxu0 %v401
        %v457 = vpop.f32.mrf.mxu0
        %v458 = vadd.f32 0.0, %v457
        %v459 = vpop.f32.mrf.mxu0
        %v460 = vadd.f32 0.0, %v459
        %461 = vmatmul.bf16.gmra.mxu0 %v404
        %v462 = vpop.f32.mrf.mxu0
        %v463 = vadd.f32 0.0, %v462
        %v464 = vpop.f32.mrf.mxu0
        %v465 = vadd.f32 0.0, %v464
        %466 = vmatmul.bf16.gmra.mxu0 %v407
        %v467 = vpop.f32.mrf.mxu0
        %v468 = vadd.f32 0.0, %v467
        %v469 = vpop.f32.mrf.mxu0
        %v470 = vadd.f32 0.0, %v469
        %471 = vmatmul.bf16.gmra.mxu0 %v410
        %v472 = vpop.f32.mrf.mxu0
        %v473 = vadd.f32 0.0, %v472
        %v474 = vpop.f32.mrf.mxu0
        %v475 = vadd.f32 0.0, %v474
        %476 = vmatmul.bf16.gmra.mxu0 %v413
        %v477 = vpop.f32.mrf.mxu0
        %v478 = vadd.f32 0.0, %v477
        %v479 = vpop.f32.mrf.mxu0
        %v480 = vadd.f32 0.0, %v479
        %481 = vmatmul.bf16.gmra.mxu0 %v416
        %v482 = vpop.f32.mrf.mxu0
        %v483 = vadd.f32 0.0, %v482
        %v484 = vpop.f32.mrf.mxu0
        %v485 = vadd.f32 0.0, %v484
        %486 = vmatmul.bf16.gmra.mxu0 %v419
        %v487 = vpop.f32.mrf.mxu0
        %v488 = vadd.f32 0.0, %v487
        %v489 = vpop.f32.mrf.mxu0
        %v490 = vadd.f32 0.0, %v489
        %491 = vmatmul.bf16.gmra.mxu0 %v422
        %v492 = vpop.f32.mrf.mxu0
        %v493 = vadd.f32 0.0, %v492
        %v494 = vpop.f32.mrf.mxu0
        %v495 = vadd.f32 0.0, %v494
        %496 = vmatmul.bf16.gmra.mxu0 %v425
        %v497 = vpop.f32.mrf.mxu0
        %v498 = vadd.f32 0.0, %v497
        %v499 = vpop.f32.mrf.mxu0
        %v500 = vadd.f32 0.0, %v499
        %501 = vmatmul.bf16.gmra.mxu0 %v428
        %v502 = vpop.f32.mrf.mxu0
        %v503 = vadd.f32 0.0, %v502
        %v504 = vpop.f32.mrf.mxu0
        %v505 = vadd.f32 0.0, %v504
        %506 = vmatmul.bf16.gmra.mxu0 %v431
        %v507 = vpop.f32.mrf.mxu0
        %v508 = vadd.f32 0.0, %v507
        %v509 = vpop.f32.mrf.mxu0
        %v510 = vadd.f32 0.0, %v509
        %511 = vmatmul.bf16.gmra.mxu0 %v434
        %v512 = vpop.f32.mrf.mxu0
        %v513 = vadd.f32 0.0, %v512
        %v514 = vpop.f32.mrf.mxu0
        %v515 = vadd.f32 0.0, %v514
        %516 = vmatmul.bf16.gmra.mxu0 %v437
        %v517 = vpop.f32.mrf.mxu0
        %v518 = vadd.f32 0.0, %v517
        %v519 = vpop.f32.mrf.mxu0
        %v520 = vadd.f32 0.0, %v519
        %521 = vmatmul.bf16.gmra.mxu0 %v440
        %v522 = vpop.f32.mrf.mxu0
        %v523 = vadd.f32 0.0, %v522
        %v524 = vpop.f32.mrf.mxu0
        %v525 = vadd.f32 0.0, %v524
        %526 = vmatmul.bf16.gmra.mxu0 %v443
        %v527 = vpop.f32.mrf.mxu0
        %v528 = vadd.f32 0.0, %v527
        %v529 = vpop.f32.mrf.mxu0
        %v530 = vadd.f32 0.0, %v529
        %531 = vmatmul.bf16.gmra.mxu0 %v446
        %v532 = vpop.f32.mrf.mxu0
        %v533 = vadd.f32 0.0, %v532
        %v534 = vpop.f32.mrf.mxu0
        %v535 = vadd.f32 0.0, %v534
        %536 = vdwg.mxu0
        %v537 = vmax.f32 %v458, %v478
        %v538 = vmax.f32 %v460, %v480
        %v539 = vmax.f32 %v463, %v483
        %v540 = vmax.f32 %v465, %v485
        %v541 = vmax.f32 %v468, %v488
        %v542 = vmax.f32 %v470, %v490
        %v543 = vmax.f32 %v473, %v493
        %v544 = vmax.f32 %v475, %v495
        %v545 = vmax.f32 %v498, %v518
        %v546 = vmax.f32 %v500, %v520
        %v547 = vmax.f32 %v503, %v523
        %v548 = vmax.f32 %v505, %v525
        %v549 = vmax.f32 %v508, %v528
        %v550 = vmax.f32 %v510, %v530
        %v551 = vmax.f32 %v513, %v533
        %v552 = vmax.f32 %v515, %v535
        %v553 = vmax.f32 %v537, %v545
        %v554 = vmax.f32 %v538, %v546
        %v555 = vmax.f32 %v539, %v547
        %v556 = vmax.f32 %v540, %v548
        %v557 = vmax.f32 %v541, %v549
        %v558 = vmax.f32 %v542, %v550
        %v559 = vmax.f32 %v543, %v551
        %v560 = vmax.f32 %v544, %v552
        %v561 = vld [vmem:[%s4] sm:$0x1]
        %v563 = vperm.slane %v561, 0
        %v565 = vadd.f32 %v553, %v563
        %v566 = vadd.f32 %v554, %v563
        %v567 = vadd.f32 %v555, %v563
        %v568 = vadd.f32 %v556, %v563
        %v569 = vadd.f32 %v557, %v563
        %v570 = vadd.f32 %v558, %v563
        %v571 = vadd.f32 %v559, %v563
        %v572 = vadd.f32 %v560, %v563
        %v573 = vpack.c.bf16 %v565, %v565
        %v574 = vpack.c.bf16 %v566, %v566
        %v575 = vpack.c.bf16 %v567, %v567
        %v576 = vpack.c.bf16 %v568, %v568
        %v577 = vpack.c.bf16 %v569, %v569
        %v578 = vpack.c.bf16 %v570, %v570
        %v579 = vpack.c.bf16 %v571, %v571
        %v580 = vpack.c.bf16 %v572, %v572
        %vm581 = vcmask 125952
        %582 = vst.msk [vmem:[#allocation3] sm:$0xf] %vm581, %v573
        %583 = vst.msk [vmem:[#allocation3 + $0x4] sm:$0xf] %vm581, %v574
        %584 = vst.msk [vmem:[#allocation3 + $0x8] sm:$0xf] %vm581, %v575
        %585 = vst.msk [vmem:[#allocation3 + $0xc] sm:$0xf] %vm581, %v576
        %586 = vst.msk [vmem:[#allocation3 + $0x10] sm:$0xf] %vm581, %v577
        %587 = vst.msk [vmem:[#allocation3 + $0x14] sm:$0xf] %vm581, %v578
        %588 = vst.msk [vmem:[#allocation3 + $0x18] sm:$0xf] %vm581, %v579
        %589 = vst.msk [vmem:[#allocation3 + $0x1c] sm:$0xf] %vm581, %v580
        %598 = vrot.lane.b32.xlu0 %v573, 112
        %v599 = vpop.permute.xlu0 %598
        %600 = vrot.lane.b32.xlu0 %v574, 112
        %v601 = vpop.permute.xlu0 %600
        %602 = vrot.lane.b32.xlu0 %v575, 112
        %v603 = vpop.permute.xlu0 %602
        %604 = vrot.lane.b32.xlu0 %v576, 112
        %v605 = vpop.permute.xlu0 %604
        %606 = vrot.lane.b32.xlu0 %v577, 112
        %v607 = vpop.permute.xlu0 %606
        %608 = vrot.lane.b32.xlu0 %v578, 112
        %v609 = vpop.permute.xlu0 %608
        %610 = vrot.lane.b32.xlu0 %v579, 112
        %v611 = vpop.permute.xlu0 %610
        %612 = vrot.lane.b32.xlu0 %v580, 112
        %v613 = vpop.permute.xlu0 %612
        %vm622 = vcmask 27648
        %623 = vst.msk [vmem:[#allocation2] sm:$0xf] %vm622, %v599
        %624 = vst.msk [vmem:[#allocation2 + $0x4] sm:$0xf] %vm622, %v601
        %625 = vst.msk [vmem:[#allocation2 + $0x8] sm:$0xf] %vm622, %v603
        %626 = vst.msk [vmem:[#allocation2 + $0xc] sm:$0xf] %vm622, %v605
        %627 = vst.msk [vmem:[#allocation2 + $0x10] sm:$0xf] %vm622, %v607
        %628 = vst.msk [vmem:[#allocation2 + $0x14] sm:$0xf] %vm622, %v609
        %629 = vst.msk [vmem:[#allocation2 + $0x18] sm:$0xf] %vm622, %v611
        %630 = vst.msk [vmem:[#allocation2 + $0x1c] sm:$0xf] %vm622, %v613
      $region56: #{tpu_custom_call.1} parent=51 // pred_fallthru
        _
      %s631 = smul.u32 %s25, 128
      %s632 = scalar_lea.vmem %s319, %s631
      %v633 = vld [vmem:[%s632] sm:$0xff]
      %v634 = vld [vmem:[%s632 + $0x8] sm:$0xff]
      %v635 = vld [vmem:[%s632 + $0x10] sm:$0xff]
      %v636 = vld [vmem:[%s632 + $0x18] sm:$0xff]
      %v637 = vld [vmem:[%s632 + $0x20] sm:$0xff]
      %v638 = vld [vmem:[%s632 + $0x28] sm:$0xff]
      %v639 = vld [vmem:[%s632 + $0x30] sm:$0xff]
      %v640 = vld [vmem:[%s632 + $0x38] sm:$0xff]
      %v641 = vld [vmem:[%s632 + $0x40] sm:$0xff]
      %v642 = vld [vmem:[%s632 + $0x48] sm:$0xff]
      %v643 = vld [vmem:[%s632 + $0x50] sm:$0xff]
      %v644 = vld [vmem:[%s632 + $0x58] sm:$0xff]
      %v645 = vld [vmem:[%s632 + $0x60] sm:$0xff]
      %v646 = vld [vmem:[%s632 + $0x68] sm:$0xff]
      %v647 = vld [vmem:[%s632 + $0x70] sm:$0xff]
      %v648 = vld [vmem:[%s632 + $0x78] sm:$0xff]
      %v649 = vpack.c.bf16 %v634, %v633
      %v650 = vpack.c.bf16 %v636, %v635
      %v651 = vpack.c.bf16 %v638, %v637
      %v652 = vpack.c.bf16 %v640, %v639
      %v653 = vpack.c.bf16 %v642, %v641
      %v654 = vpack.c.bf16 %v644, %v643
      %v655 = vpack.c.bf16 %v646, %v645
      %v656 = vpack.c.bf16 %v648, %v647
      %v657 = vld [vmem:[%s1] sm:$0xf]
      %v658 = vld [vmem:[%s1 + $0x4] sm:$0xf]
      %v659 = vld [vmem:[%s1 + $0x8] sm:$0xf]
      %v660 = vld [vmem:[%s1 + $0xc] sm:$0xf]
      %v661 = vld [vmem:[%s2] sm:$0x1]
      %v663 = vperm.slane %v661, 0
      %v669 = vunpack.c.l.b16 %v657
      %v670 = vunpack.c.l.b16 %v658
      %v671 = vunpack.c.l.b16 %v659
      %v672 = vunpack.c.l.b16 %v660
      %v673 = vpack.c.b16 %v670, %v669
      %v674 = vpack.c.b16 %v672, %v671
      %vm677 = vcmask 261120
      %v679 = vsel %vm677, %v649, 0
      %v682 = vsel %vm677, %v650, 0
      %v685 = vsel %vm677, %v651, 0
      %v688 = vsel %vm677, %v652, 0
      %v691 = vsel %vm677, %v653, 0
      %v694 = vsel %vm677, %v654, 0
      %v697 = vsel %vm677, %v655, 0
      %v700 = vsel %vm677, %v656, 0
      %702 = vmatpush.bf16.msra.mxu0 0
      %703 = vmatpush.bf16.msra.mxu0 0
      %704 = vmatpush.bf16.msra.mxu0 0
      %705 = vmatpush.bf16.msra.mxu0 0
      %706 = vmatpush.bf16.msra.mxu0 0
      %707 = vmatpush.bf16.msra.mxu0 0
      %708 = vmatpush.bf16.msra.mxu0 %v674
      %709 = vmatpush.bf16.msra.mxu0 %v673
      %710 = vmatmul.bf16.gmra.mxu0 %v679
      %v711 = vpop.f32.mrf.mxu0
      %v712 = vadd.f32 %v663, %v711
      %v713 = vpop.f32.mrf.mxu0
      %v714 = vadd.f32 %v663, %v713
      %715 = vmatmul.bf16.gmra.mxu0 %v682
      %v716 = vpop.f32.mrf.mxu0
      %v717 = vadd.f32 %v663, %v716
      %v718 = vpop.f32.mrf.mxu0
      %v719 = vadd.f32 %v663, %v718
      %720 = vmatmul.bf16.gmra.mxu0 %v685
      %v721 = vpop.f32.mrf.mxu0
      %v722 = vadd.f32 %v663, %v721
      %v723 = vpop.f32.mrf.mxu0
      %v724 = vadd.f32 %v663, %v723
      %725 = vmatmul.bf16.gmra.mxu0 %v688
      %v726 = vpop.f32.mrf.mxu0
      %v727 = vadd.f32 %v663, %v726
      %v728 = vpop.f32.mrf.mxu0
      %v729 = vadd.f32 %v663, %v728
      %730 = vmatmul.bf16.gmra.mxu0 %v691
      %v731 = vpop.f32.mrf.mxu0
      %v732 = vadd.f32 %v663, %v731
      %v733 = vpop.f32.mrf.mxu0
      %v734 = vadd.f32 %v663, %v733
      %735 = vmatmul.bf16.gmra.mxu0 %v694
      %v736 = vpop.f32.mrf.mxu0
      %v737 = vadd.f32 %v663, %v736
      %v738 = vpop.f32.mrf.mxu0
      %v739 = vadd.f32 %v663, %v738
      %740 = vmatmul.bf16.gmra.mxu0 %v697
      %v741 = vpop.f32.mrf.mxu0
      %v742 = vadd.f32 %v663, %v741
      %v743 = vpop.f32.mrf.mxu0
      %v744 = vadd.f32 %v663, %v743
      %745 = vmatmul.bf16.gmra.mxu0 %v700
      %v746 = vpop.f32.mrf.mxu0
      %v747 = vadd.f32 %v663, %v746
      %v748 = vpop.f32.mrf.mxu0
      %v749 = vadd.f32 %v663, %v748
      %750 = vdwg.mxu0
      %v751 = vpack.c.bf16 %v714, %v712
      %v752 = vpack.c.bf16 %v719, %v717
      %v753 = vpack.c.bf16 %v724, %v722
      %v754 = vpack.c.bf16 %v729, %v727
      %v755 = vpack.c.bf16 %v734, %v732
      %v756 = vpack.c.bf16 %v739, %v737
      %v757 = vpack.c.bf16 %v744, %v742
      %v758 = vpack.c.bf16 %v749, %v747
      %v759 = vld [vmem:[#allocation2] sm:$0xf]
      %v760 = vld [vmem:[#allocation2 + $0x4] sm:$0xf]
      %v761 = vld [vmem:[#allocation2 + $0x8] sm:$0xf]
      %v762 = vld [vmem:[#allocation2 + $0xc] sm:$0xf]
      %v763 = vld [vmem:[#allocation2 + $0x10] sm:$0xf]
      %v764 = vld [vmem:[#allocation2 + $0x14] sm:$0xf]
      %v765 = vld [vmem:[#allocation2 + $0x18] sm:$0xf]
      %v766 = vld [vmem:[#allocation2 + $0x1c] sm:$0xf]
      %v775 = vunpack.c.l.b16 %v759
      %v776 = vunpack.c.l.b16 %v760
      %v777 = vunpack.c.l.b16 %v761
      %v778 = vunpack.c.l.b16 %v762
      %v779 = vunpack.c.l.b16 %v763
      %v780 = vunpack.c.l.b16 %v764
      %v781 = vunpack.c.l.b16 %v765
      %v782 = vunpack.c.l.b16 %v766
      %v783 = vpack.c.b16 %v776, %v775
      %v784 = vpack.c.b16 %v778, %v777
      %v785 = vpack.c.b16 %v780, %v779
      %v786 = vpack.c.b16 %v782, %v781
      %vm787 = vcmask 31744
      %v789 = vsel %vm787, %v751, 0
      %v792 = vsel %vm787, %v752, 0
      %v795 = vsel %vm787, %v753, 0
      %v798 = vsel %vm787, %v754, 0
      %v801 = vsel %vm787, %v755, 0
      %v804 = vsel %vm787, %v756, 0
      %v807 = vsel %vm787, %v757, 0
      %v810 = vsel %vm787, %v758, 0
      %v813 = vsel %vm787, %v783, 0
      %v816 = vsel %vm787, %v784, 0
      %v819 = vsel %vm787, %v785, 0
      %v822 = vsel %vm787, %v786, 0
      %824 = vmatpush.bf16.xpose.msra.mxu0 0
      %825 = vmatpush.bf16.xpose.msra.mxu0 0
      %826 = vmatpush.bf16.xpose.msra.mxu0 0
      %827 = vmatpush.bf16.xpose.msra.mxu0 0
      %828 = vmatpush.bf16.xpose.msra.mxu0 %v822
      %829 = vmatpush.bf16.xpose.msra.mxu0 %v819
      %830 = vmatpush.bf16.xpose.msra.mxu0 %v816
      %831 = vmatpush.bf16.xpose.msra.mxu0 %v813
      %832 = vmatmul.bf16.gmra.mxu0 %v789
      %v833 = vpop.f32.mrf.mxu0
      %v834 = vadd.f32 0.0, %v833
      %v835 = vpop.f32.mrf.mxu0
      %v836 = vadd.f32 0.0, %v835
      %837 = vmatmul.bf16.gmra.mxu0 %v792
      %v838 = vpop.f32.mrf.mxu0
      %v839 = vadd.f32 0.0, %v838
      %v840 = vpop.f32.mrf.mxu0
      %v841 = vadd.f32 0.0, %v840
      %842 = vmatmul.bf16.gmra.mxu0 %v795
      %v843 = vpop.f32.mrf.mxu0
      %v844 = vadd.f32 0.0, %v843
      %v845 = vpop.f32.mrf.mxu0
      %v846 = vadd.f32 0.0, %v845
      %847 = vmatmul.bf16.gmra.mxu0 %v798
      %v848 = vpop.f32.mrf.mxu0
      %v849 = vadd.f32 0.0, %v848
      %v850 = vpop.f32.mrf.mxu0
      %v851 = vadd.f32 0.0, %v850
      %852 = vmatmul.bf16.gmra.mxu0 %v801
      %v853 = vpop.f32.mrf.mxu0
      %v854 = vadd.f32 0.0, %v853
      %v855 = vpop.f32.mrf.mxu0
      %v856 = vadd.f32 0.0, %v855
      %857 = vmatmul.bf16.gmra.mxu0 %v804
      %v858 = vpop.f32.mrf.mxu0
      %v859 = vadd.f32 0.0, %v858
      %v860 = vpop.f32.mrf.mxu0
      %v861 = vadd.f32 0.0, %v860
      %862 = vmatmul.bf16.gmra.mxu0 %v807
      %v863 = vpop.f32.mrf.mxu0
      %v864 = vadd.f32 0.0, %v863
      %v865 = vpop.f32.mrf.mxu0
      %v866 = vadd.f32 0.0, %v865
      %867 = vmatmul.bf16.gmra.mxu0 %v810
      %v868 = vpop.f32.mrf.mxu0
      %v869 = vadd.f32 0.0, %v868
      %v870 = vpop.f32.mrf.mxu0
      %v871 = vadd.f32 0.0, %v870
      %872 = vdwg.mxu0
      %vm873 = vcmask 523264
      %v874 = vsel %vm873, %v834, -inf
      %875 = vmax.xlane.f32.xlu0 %v874
      %v876 = vpop.xlane.xlu0 %875
      %v877 = vsel %vm873, %v836, -inf
      %878 = vmax.xlane.f32.xlu0 %v877
      %v879 = vpop.xlane.xlu0 %878
      %v880 = vsel %vm873, %v839, -inf
      %881 = vmax.xlane.f32.xlu0 %v880
      %v882 = vpop.xlane.xlu0 %881
      %v883 = vsel %vm873, %v841, -inf
      %884 = vmax.xlane.f32.xlu0 %v883
      %v885 = vpop.xlane.xlu0 %884
      %v886 = vsel %vm873, %v844, -inf
      %887 = vmax.xlane.f32.xlu0 %v886
      %v888 = vpop.xlane.xlu0 %887
      %v889 = vsel %vm873, %v846, -inf
      %890 = vmax.xlane.f32.xlu0 %v889
      %v891 = vpop.xlane.xlu0 %890
      %v892 = vsel %vm873, %v849, -inf
      %893 = vmax.xlane.f32.xlu0 %v892
      %v894 = vpop.xlane.xlu0 %893
      %v895 = vsel %vm873, %v851, -inf
      %896 = vmax.xlane.f32.xlu0 %v895
      %v897 = vpop.xlane.xlu0 %896
      %v898 = vsel %vm873, %v854, -inf
      %899 = vmax.xlane.f32.xlu0 %v898
      %v900 = vpop.xlane.xlu0 %899
      %v901 = vsel %vm873, %v856, -inf
      %902 = vmax.xlane.f32.xlu0 %v901
      %v903 = vpop.xlane.xlu0 %902
      %v904 = vsel %vm873, %v859, -inf
      %905 = vmax.xlane.f32.xlu0 %v904
      %v906 = vpop.xlane.xlu0 %905
      %v907 = vsel %vm873, %v861, -inf
      %908 = vmax.xlane.f32.xlu0 %v907
      %v909 = vpop.xlane.xlu0 %908
      %v910 = vsel %vm873, %v864, -inf
      %911 = vmax.xlane.f32.xlu0 %v910
      %v912 = vpop.xlane.xlu0 %911
      %v913 = vsel %vm873, %v866, -inf
      %914 = vmax.xlane.f32.xlu0 %v913
      %v915 = vpop.xlane.xlu0 %914
      %v916 = vsel %vm873, %v869, -inf
      %917 = vmax.xlane.f32.xlu0 %v916
      %v918 = vpop.xlane.xlu0 %917
      %v919 = vsel %vm873, %v871, -inf
      %920 = vmax.xlane.f32.xlu0 %v919
      %v921 = vpop.xlane.xlu0 %920
      %v922 = vsub.f32 %v834, %v876
      %v923 = vsub.f32 %v836, %v879
      %v924 = vsub.f32 %v839, %v882
      %v925 = vsub.f32 %v841, %v885
      %v926 = vsub.f32 %v844, %v888
      %v927 = vsub.f32 %v846, %v891
      %v928 = vsub.f32 %v849, %v894
      %v929 = vsub.f32 %v851, %v897
      %v930 = vsub.f32 %v854, %v900
      %v931 = vsub.f32 %v856, %v903
      %v932 = vsub.f32 %v859, %v906
      %v933 = vsub.f32 %v861, %v909
      %v934 = vsub.f32 %v864, %v912
      %v935 = vsub.f32 %v866, %v915
      %v936 = vsub.f32 %v869, %v918
      %v937 = vsub.f32 %v871, %v921
      %v938 = vmul.f32 %v922, 1.442695
      %v939 = vpow.pop %v938
      %v940 = vmul.f32 %v923, 1.442695
      %v941 = vpow.pop %v940
      %v942 = vmul.f32 %v924, 1.442695
      %v943 = vpow.pop %v942
      %v944 = vmul.f32 %v925, 1.442695
      %v945 = vpow.pop %v944
      %v946 = vmul.f32 %v926, 1.442695
      %v947 = vpow.pop %v946
      %v948 = vmul.f32 %v927, 1.442695
      %v949 = vpow.pop %v948
      %v950 = vmul.f32 %v928, 1.442695
      %v951 = vpow.pop %v950
      %v952 = vmul.f32 %v929, 1.442695
      %v953 = vpow.pop %v952
      %v954 = vmul.f32 %v930, 1.442695
      %v955 = vpow.pop %v954
      %v956 = vmul.f32 %v931, 1.442695
      %v957 = vpow.pop %v956
      %v958 = vmul.f32 %v932, 1.442695
      %v959 = vpow.pop %v958
      %v960 = vmul.f32 %v933, 1.442695
      %v961 = vpow.pop %v960
      %v962 = vmul.f32 %v934, 1.442695
      %v963 = vpow.pop %v962
      %v964 = vmul.f32 %v935, 1.442695
      %v965 = vpow.pop %v964
      %v966 = vmul.f32 %v936, 1.442695
      %v967 = vpow.pop %v966
      %v968 = vmul.f32 %v937, 1.442695
      %v969 = vpow.pop %v968
      %v970 = vsel %vm873, %v939, 0.0
      %971 = vadd.xlane.f32.xlu0 %v970
      %v972 = vpop.xlane.xlu0 %971
      %v973 = vsel %vm873, %v941, 0.0
      %974 = vadd.xlane.f32.xlu0 %v973
      %v975 = vpop.xlane.xlu0 %974
      %v976 = vsel %vm873, %v943, 0.0
      %977 = vadd.xlane.f32.xlu0 %v976
      %v978 = vpop.xlane.xlu0 %977
      %v979 = vsel %vm873, %v945, 0.0
      %980 = vadd.xlane.f32.xlu0 %v979
      %v981 = vpop.xlane.xlu0 %980
      %v982 = vsel %vm873, %v947, 0.0
      %983 = vadd.xlane.f32.xlu0 %v982
      %v984 = vpop.xlane.xlu0 %983
      %v985 = vsel %vm873, %v949, 0.0
      %986 = vadd.xlane.f32.xlu0 %v985
      %v987 = vpop.xlane.xlu0 %986
      %v988 = vsel %vm873, %v951, 0.0
      %989 = vadd.xlane.f32.xlu0 %v988
      %v990 = vpop.xlane.xlu0 %989
      %v991 = vsel %vm873, %v953, 0.0
      %992 = vadd.xlane.f32.xlu0 %v991
      %v993 = vpop.xlane.xlu0 %992
      %v994 = vsel %vm873, %v955, 0.0
      %995 = vadd.xlane.f32.xlu0 %v994
      %v996 = vpop.xlane.xlu0 %995
      %v997 = vsel %vm873, %v957, 0.0
      %998 = vadd.xlane.f32.xlu0 %v997
      %v999 = vpop.xlane.xlu0 %998
      %v1000 = vsel %vm873, %v959, 0.0
      %1001 = vadd.xlane.f32.xlu0 %v1000
      %v1002 = vpop.xlane.xlu0 %1001
      %v1003 = vsel %vm873, %v961, 0.0
      %1004 = vadd.xlane.f32.xlu0 %v1003
      %v1005 = vpop.xlane.xlu0 %1004
      %v1006 = vsel %vm873, %v963, 0.0
      %1007 = vadd.xlane.f32.xlu0 %v1006
      %v1008 = vpop.xlane.xlu0 %1007
      %v1009 = vsel %vm873, %v965, 0.0
      %1010 = vadd.xlane.f32.xlu0 %v1009
      %v1011 = vpop.xlane.xlu0 %1010
      %v1012 = vsel %vm873, %v967, 0.0
      %1013 = vadd.xlane.f32.xlu0 %v1012
      %v1014 = vpop.xlane.xlu0 %1013
      %v1015 = vsel %vm873, %v969, 0.0
      %1016 = vadd.xlane.f32.xlu0 %v1015
      %v1017 = vpop.xlane.xlu0 %1016
      %v1018 = vrcp.pop %v972
      %v1019 = vmul.f32 %v972, %v1018
      %v1020 = vsub.f32 1.0, %v1019
      %v1021 = vmul.f32 %v1018, %v1020
      %v1022 = vadd.f32 %v1018, %v1021
      %vm1023 = vweird.f32 %v972
      %vm1024 = vweird.f32 %v1018
      %vm1025 = vmor %vm1023, %vm1024
      %v1026 = vsel %vm1025, %v1018, %v1022
      %v1027 = vand.u32 2147483647, %v972
      %vm1028 = vcmp.eq.f32.partialorder %v1027, 8.507059e+37
      %v1029 = vand.u32 %v972, 2147483648
      %v1030 = vor.u32 1.1754944e-38, %v1029
      %v1031 = vsel %vm1028, %v1030, %v1026
      %v1032 = vrcp.pop %v975
      %v1033 = vmul.f32 %v975, %v1032
      %v1034 = vsub.f32 1.0, %v1033
      %v1035 = vmul.f32 %v1032, %v1034
      %v1036 = vadd.f32 %v1032, %v1035
      %vm1037 = vweird.f32 %v975
      %vm1038 = vweird.f32 %v1032
      %vm1039 = vmor %vm1037, %vm1038
      %v1040 = vsel %vm1039, %v1032, %v1036
      %v1041 = vand.u32 2147483647, %v975
      %vm1042 = vcmp.eq.f32.partialorder %v1041, 8.507059e+37
      %v1043 = vand.u32 %v975, 2147483648
      %v1044 = vor.u32 1.1754944e-38, %v1043
      %v1045 = vsel %vm1042, %v1044, %v1040
      %v1046 = vrcp.pop %v978
      %v1047 = vmul.f32 %v978, %v1046
      %v1048 = vsub.f32 1.0, %v1047
      %v1049 = vmul.f32 %v1046, %v1048
      %v1050 = vadd.f32 %v1046, %v1049
      %vm1051 = vweird.f32 %v978
      %vm1052 = vweird.f32 %v1046
      %vm1053 = vmor %vm1051, %vm1052
      %v1054 = vsel %vm1053, %v1046, %v1050
      %v1055 = vand.u32 2147483647, %v978
      %vm1056 = vcmp.eq.f32.partialorder %v1055, 8.507059e+37
      %v1057 = vand.u32 %v978, 2147483648
      %v1058 = vor.u32 1.1754944e-38, %v1057
      %v1059 = vsel %vm1056, %v1058, %v1054
      %v1060 = vrcp.pop %v981
      %v1061 = vmul.f32 %v981, %v1060
      %v1062 = vsub.f32 1.0, %v1061
      %v1063 = vmul.f32 %v1060, %v1062
      %v1064 = vadd.f32 %v1060, %v1063
      %vm1065 = vweird.f32 %v981
      %vm1066 = vweird.f32 %v1060
      %vm1067 = vmor %vm1065, %vm1066
      %v1068 = vsel %vm1067, %v1060, %v1064
      %v1069 = vand.u32 2147483647, %v981
      %vm1070 = vcmp.eq.f32.partialorder %v1069, 8.507059e+37
      %v1071 = vand.u32 %v981, 2147483648
      %v1072 = vor.u32 1.1754944e-38, %v1071
      %v1073 = vsel %vm1070, %v1072, %v1068
      %v1074 = vrcp.pop %v984
      %v1075 = vmul.f32 %v984, %v1074
      %v1076 = vsub.f32 1.0, %v1075
      %v1077 = vmul.f32 %v1074, %v1076
      %v1078 = vadd.f32 %v1074, %v1077
      %vm1079 = vweird.f32 %v984
      %vm1080 = vweird.f32 %v1074
      %vm1081 = vmor %vm1079, %vm1080
      %v1082 = vsel %vm1081, %v1074, %v1078
      %v1083 = vand.u32 2147483647, %v984
      %vm1084 = vcmp.eq.f32.partialorder %v1083, 8.507059e+37
      %v1085 = vand.u32 %v984, 2147483648
      %v1086 = vor.u32 1.1754944e-38, %v1085
      %v1087 = vsel %vm1084, %v1086, %v1082
      %v1088 = vrcp.pop %v987
      %v1089 = vmul.f32 %v987, %v1088
      %v1090 = vsub.f32 1.0, %v1089
      %v1091 = vmul.f32 %v1088, %v1090
      %v1092 = vadd.f32 %v1088, %v1091
      %vm1093 = vweird.f32 %v987
      %vm1094 = vweird.f32 %v1088
      %vm1095 = vmor %vm1093, %vm1094
      %v1096 = vsel %vm1095, %v1088, %v1092
      %v1097 = vand.u32 2147483647, %v987
      %vm1098 = vcmp.eq.f32.partialorder %v1097, 8.507059e+37
      %v1099 = vand.u32 %v987, 2147483648
      %v1100 = vor.u32 1.1754944e-38, %v1099
      %v1101 = vsel %vm1098, %v1100, %v1096
      %v1102 = vrcp.pop %v990
      %v1103 = vmul.f32 %v990, %v1102
      %v1104 = vsub.f32 1.0, %v1103
      %v1105 = vmul.f32 %v1102, %v1104
      %v1106 = vadd.f32 %v1102, %v1105
      %vm1107 = vweird.f32 %v990
      %vm1108 = vweird.f32 %v1102
      %vm1109 = vmor %vm1107, %vm1108
      %v1110 = vsel %vm1109, %v1102, %v1106
      %v1111 = vand.u32 2147483647, %v990
      %vm1112 = vcmp.eq.f32.partialorder %v1111, 8.507059e+37
      %v1113 = vand.u32 %v990, 2147483648
      %v1114 = vor.u32 1.1754944e-38, %v1113
      %v1115 = vsel %vm1112, %v1114, %v1110
      %v1116 = vrcp.pop %v993
      %v1117 = vmul.f32 %v993, %v1116
      %v1118 = vsub.f32 1.0, %v1117
      %v1119 = vmul.f32 %v1116, %v1118
      %v1120 = vadd.f32 %v1116, %v1119
      %vm1121 = vweird.f32 %v993
      %vm1122 = vweird.f32 %v1116
      %vm1123 = vmor %vm1121, %vm1122
      %v1124 = vsel %vm1123, %v1116, %v1120
      %v1125 = vand.u32 2147483647, %v993
      %vm1126 = vcmp.eq.f32.partialorder %v1125, 8.507059e+37
      %v1127 = vand.u32 %v993, 2147483648
      %v1128 = vor.u32 1.1754944e-38, %v1127
      %v1129 = vsel %vm1126, %v1128, %v1124
      %v1130 = vrcp.pop %v996
      %v1131 = vmul.f32 %v996, %v1130
      %v1132 = vsub.f32 1.0, %v1131
      %v1133 = vmul.f32 %v1130, %v1132
      %v1134 = vadd.f32 %v1130, %v1133
      %vm1135 = vweird.f32 %v996
      %vm1136 = vweird.f32 %v1130
      %vm1137 = vmor %vm1135, %vm1136
      %v1138 = vsel %vm1137, %v1130, %v1134
      %v1139 = vand.u32 2147483647, %v996
      %vm1140 = vcmp.eq.f32.partialorder %v1139, 8.507059e+37
      %v1141 = vand.u32 %v996, 2147483648
      %v1142 = vor.u32 1.1754944e-38, %v1141
      %v1143 = vsel %vm1140, %v1142, %v1138
      %v1144 = vrcp.pop %v999
      %v1145 = vmul.f32 %v999, %v1144
      %v1146 = vsub.f32 1.0, %v1145
      %v1147 = vmul.f32 %v1144, %v1146
      %v1148 = vadd.f32 %v1144, %v1147
      %vm1149 = vweird.f32 %v999
      %vm1150 = vweird.f32 %v1144
      %vm1151 = vmor %vm1149, %vm1150
      %v1152 = vsel %vm1151, %v1144, %v1148
      %v1153 = vand.u32 2147483647, %v999
      %vm1154 = vcmp.eq.f32.partialorder %v1153, 8.507059e+37
      %v1155 = vand.u32 %v999, 2147483648
      %v1156 = vor.u32 1.1754944e-38, %v1155
      %v1157 = vsel %vm1154, %v1156, %v1152
      %v1158 = vrcp.pop %v1002
      %v1159 = vmul.f32 %v1002, %v1158
      %v1160 = vsub.f32 1.0, %v1159
      %v1161 = vmul.f32 %v1158, %v1160
      %v1162 = vadd.f32 %v1158, %v1161
      %vm1163 = vweird.f32 %v1002
      %vm1164 = vweird.f32 %v1158
      %vm1165 = vmor %vm1163, %vm1164
      %v1166 = vsel %vm1165, %v1158, %v1162
      %v1167 = vand.u32 2147483647, %v1002
      %vm1168 = vcmp.eq.f32.partialorder %v1167, 8.507059e+37
      %v1169 = vand.u32 %v1002, 2147483648
      %v1170 = vor.u32 1.1754944e-38, %v1169
      %v1171 = vsel %vm1168, %v1170, %v1166
      %v1172 = vrcp.pop %v1005
      %v1173 = vmul.f32 %v1005, %v1172
      %v1174 = vsub.f32 1.0, %v1173
      %v1175 = vmul.f32 %v1172, %v1174
      %v1176 = vadd.f32 %v1172, %v1175
      %vm1177 = vweird.f32 %v1005
      %vm1178 = vweird.f32 %v1172
      %vm1179 = vmor %vm1177, %vm1178
      %v1180 = vsel %vm1179, %v1172, %v1176
      %v1181 = vand.u32 2147483647, %v1005
      %vm1182 = vcmp.eq.f32.partialorder %v1181, 8.507059e+37
      %v1183 = vand.u32 %v1005, 2147483648
      %v1184 = vor.u32 1.1754944e-38, %v1183
      %v1185 = vsel %vm1182, %v1184, %v1180
      %v1186 = vrcp.pop %v1008
      %v1187 = vmul.f32 %v1008, %v1186
      %v1188 = vsub.f32 1.0, %v1187
      %v1189 = vmul.f32 %v1186, %v1188
      %v1190 = vadd.f32 %v1186, %v1189
      %vm1191 = vweird.f32 %v1008
      %vm1192 = vweird.f32 %v1186
      %vm1193 = vmor %vm1191, %vm1192
      %v1194 = vsel %vm1193, %v1186, %v1190
      %v1195 = vand.u32 2147483647, %v1008
      %vm1196 = vcmp.eq.f32.partialorder %v1195, 8.507059e+37
      %v1197 = vand.u32 %v1008, 2147483648
      %v1198 = vor.u32 1.1754944e-38, %v1197
      %v1199 = vsel %vm1196, %v1198, %v1194
      %v1200 = vrcp.pop %v1011
      %v1201 = vmul.f32 %v1011, %v1200
      %v1202 = vsub.f32 1.0, %v1201
      %v1203 = vmul.f32 %v1200, %v1202
      %v1204 = vadd.f32 %v1200, %v1203
      %vm1205 = vweird.f32 %v1011
      %vm1206 = vweird.f32 %v1200
      %vm1207 = vmor %vm1205, %vm1206
      %v1208 = vsel %vm1207, %v1200, %v1204
      %v1209 = vand.u32 2147483647, %v1011
      %vm1210 = vcmp.eq.f32.partialorder %v1209, 8.507059e+37
      %v1211 = vand.u32 %v1011, 2147483648
      %v1212 = vor.u32 1.1754944e-38, %v1211
      %v1213 = vsel %vm1210, %v1212, %v1208
      %v1214 = vrcp.pop %v1014
      %v1215 = vmul.f32 %v1014, %v1214
      %v1216 = vsub.f32 1.0, %v1215
      %v1217 = vmul.f32 %v1214, %v1216
      %v1218 = vadd.f32 %v1214, %v1217
      %vm1219 = vweird.f32 %v1014
      %vm1220 = vweird.f32 %v1214
      %vm1221 = vmor %vm1219, %vm1220
      %v1222 = vsel %vm1221, %v1214, %v1218
      %v1223 = vand.u32 2147483647, %v1014
      %vm1224 = vcmp.eq.f32.partialorder %v1223, 8.507059e+37
      %v1225 = vand.u32 %v1014, 2147483648
      %v1226 = vor.u32 1.1754944e-38, %v1225
      %v1227 = vsel %vm1224, %v1226, %v1222
      %v1228 = vrcp.pop %v1017
      %v1229 = vmul.f32 %v1017, %v1228
      %v1230 = vsub.f32 1.0, %v1229
      %v1231 = vmul.f32 %v1228, %v1230
      %v1232 = vadd.f32 %v1228, %v1231
      %vm1233 = vweird.f32 %v1017
      %vm1234 = vweird.f32 %v1228
      %vm1235 = vmor %vm1233, %vm1234
      %v1236 = vsel %vm1235, %v1228, %v1232
      %v1237 = vand.u32 2147483647, %v1017
      %vm1238 = vcmp.eq.f32.partialorder %v1237, 8.507059e+37
      %v1239 = vand.u32 %v1017, 2147483648
      %v1240 = vor.u32 1.1754944e-38, %v1239
      %v1241 = vsel %vm1238, %v1240, %v1236
      %v1242 = vmul.f32 %v939, %v1031
      %v1243 = vmul.f32 %v941, %v1045
      %v1244 = vmul.f32 %v943, %v1059
      %v1245 = vmul.f32 %v945, %v1073
      %v1246 = vmul.f32 %v947, %v1087
      %v1247 = vmul.f32 %v949, %v1101
      %v1248 = vmul.f32 %v951, %v1115
      %v1249 = vmul.f32 %v953, %v1129
      %v1250 = vmul.f32 %v955, %v1143
      %v1251 = vmul.f32 %v957, %v1157
      %v1252 = vmul.f32 %v959, %v1171
      %v1253 = vmul.f32 %v961, %v1185
      %v1254 = vmul.f32 %v963, %v1199
      %v1255 = vmul.f32 %v965, %v1213
      %v1256 = vmul.f32 %v967, %v1227
      %v1257 = vmul.f32 %v969, %v1241
      %v1258 = vpack.c.bf16 %v1243, %v1242
      %v1259 = vpack.c.bf16 %v1245, %v1244
      %v1260 = vpack.c.bf16 %v1247, %v1246
      %v1261 = vpack.c.bf16 %v1249, %v1248
      %v1262 = vpack.c.bf16 %v1251, %v1250
      %v1263 = vpack.c.bf16 %v1253, %v1252
      %v1264 = vpack.c.bf16 %v1255, %v1254
      %v1265 = vpack.c.bf16 %v1257, %v1256
      %v1266 = vld [vmem:[#allocation3] sm:$0xf]
      %v1267 = vld [vmem:[#allocation3 + $0x4] sm:$0xf]
      %v1268 = vld [vmem:[#allocation3 + $0x8] sm:$0xf]
      %v1269 = vld [vmem:[#allocation3 + $0xc] sm:$0xf]
      %v1270 = vld [vmem:[#allocation3 + $0x10] sm:$0xf]
      %v1271 = vld [vmem:[#allocation3 + $0x14] sm:$0xf]
      %v1272 = vld [vmem:[#allocation3 + $0x18] sm:$0xf]
      %v1273 = vld [vmem:[#allocation3 + $0x1c] sm:$0xf]
      %v1282 = vunpack.c.l.b16 %v1266
      %v1283 = vunpack.c.l.b16 %v1267
      %v1284 = vunpack.c.l.b16 %v1268
      %v1285 = vunpack.c.l.b16 %v1269
      %v1286 = vunpack.c.l.b16 %v1270
      %v1287 = vunpack.c.l.b16 %v1271
      %v1288 = vunpack.c.l.b16 %v1272
      %v1289 = vunpack.c.l.b16 %v1273
      %v1290 = vpack.c.b16 %v1283, %v1282
      %v1291 = vpack.c.b16 %v1285, %v1284
      %v1292 = vpack.c.b16 %v1287, %v1286
      %v1293 = vpack.c.b16 %v1289, %v1288
      %v1299 = vsel %vm873, %v1258, 0
      %v1302 = vsel %vm873, %v1259, 0
      %v1305 = vsel %vm873, %v1260, 0
      %v1308 = vsel %vm873, %v1261, 0
      %v1311 = vsel %vm873, %v1262, 0
      %v1314 = vsel %vm873, %v1263, 0
      %v1317 = vsel %vm873, %v1264, 0
      %v1320 = vsel %vm873, %v1265, 0
      %1322 = vmatpush.bf16.msra.mxu0 0
      %1323 = vmatpush.bf16.msra.mxu0 0
      %1324 = vmatpush.bf16.msra.mxu0 0
      %1325 = vmatpush.bf16.msra.mxu0 0
      %1326 = vmatpush.bf16.msra.mxu0 %v1293
      %1327 = vmatpush.bf16.msra.mxu0 %v1292
      %1328 = vmatpush.bf16.msra.mxu0 %v1291
      %1329 = vmatpush.bf16.msra.mxu0 %v1290
      %1330 = vmatmul.bf16.gmra.mxu0 %v1299
      %v1331 = vpop.f32.mrf.mxu0
      %v1332 = vadd.f32 0.0, %v1331
      %v1333 = vpop.f32.mrf.mxu0
      %v1334 = vadd.f32 0.0, %v1333
      %1335 = vmatmul.bf16.gmra.mxu0 %v1302
      %v1336 = vpop.f32.mrf.mxu0
      %v1337 = vadd.f32 0.0, %v1336
      %v1338 = vpop.f32.mrf.mxu0
      %v1339 = vadd.f32 0.0, %v1338
      %1340 = vmatmul.bf16.gmra.mxu0 %v1305
      %v1341 = vpop.f32.mrf.mxu0
      %v1342 = vadd.f32 0.0, %v1341
      %v1343 = vpop.f32.mrf.mxu0
      %v1344 = vadd.f32 0.0, %v1343
      %1345 = vmatmul.bf16.gmra.mxu0 %v1308
      %v1346 = vpop.f32.mrf.mxu0
      %v1347 = vadd.f32 0.0, %v1346
      %v1348 = vpop.f32.mrf.mxu0
      %v1349 = vadd.f32 0.0, %v1348
      %1350 = vmatmul.bf16.gmra.mxu0 %v1311
      %v1351 = vpop.f32.mrf.mxu0
      %v1352 = vadd.f32 0.0, %v1351
      %v1353 = vpop.f32.mrf.mxu0
      %v1354 = vadd.f32 0.0, %v1353
      %1355 = vmatmul.bf16.gmra.mxu0 %v1314
      %v1356 = vpop.f32.mrf.mxu0
      %v1357 = vadd.f32 0.0, %v1356
      %v1358 = vpop.f32.mrf.mxu0
      %v1359 = vadd.f32 0.0, %v1358
      %1360 = vmatmul.bf16.gmra.mxu0 %v1317
      %v1361 = vpop.f32.mrf.mxu0
      %v1362 = vadd.f32 0.0, %v1361
      %v1363 = vpop.f32.mrf.mxu0
      %v1364 = vadd.f32 0.0, %v1363
      %1365 = vmatmul.bf16.gmra.mxu0 %v1320
      %v1366 = vpop.f32.mrf.mxu0
      %v1367 = vadd.f32 0.0, %v1366
      %v1368 = vpop.f32.mrf.mxu0
      %v1369 = vadd.f32 0.0, %v1368
      %1370 = vdwg.mxu0
      %v1371 = vpack.c.bf16 %v1334, %v1332
      %v1372 = vpack.c.bf16 %v1339, %v1337
      %v1373 = vpack.c.bf16 %v1344, %v1342
      %v1374 = vpack.c.bf16 %v1349, %v1347
      %v1375 = vpack.c.bf16 %v1354, %v1352
      %v1376 = vpack.c.bf16 %v1359, %v1357
      %v1377 = vpack.c.bf16 %v1364, %v1362
      %v1378 = vpack.c.bf16 %v1369, %v1367
      %v1379 = vld [vmem:[%s5] sm:$0xf]
      %v1380 = vld [vmem:[%s5 + $0x4] sm:$0xf]
      %v1381 = vld [vmem:[%s6] sm:$0x1]
      %v1383 = vperm.slane %v1381, 0
      %v1387 = vunpack.c.l.b16 %v1379
      %v1388 = vunpack.c.l.b16 %v1380
      %v1389 = vpack.c.b16 %v1388, %v1387
      %vm1391 = vcmask 130048
      %v1393 = vsel %vm1391, %v1371, 0
      %v1396 = vsel %vm1391, %v1372, 0
      %v1399 = vsel %vm1391, %v1373, 0
      %v1402 = vsel %vm1391, %v1374, 0
      %v1405 = vsel %vm1391, %v1375, 0
      %v1408 = vsel %vm1391, %v1376, 0
      %v1411 = vsel %vm1391, %v1377, 0
      %v1414 = vsel %vm1391, %v1378, 0
      %1416 = vmatpush.bf16.msra.mxu0 0
      %1417 = vmatpush.bf16.msra.mxu0 0
      %1418 = vmatpush.bf16.msra.mxu0 0
      %1419 = vmatpush.bf16.msra.mxu0 0
      %1420 = vmatpush.bf16.msra.mxu0 0
      %1421 = vmatpush.bf16.msra.mxu0 0
      %1422 = vmatpush.bf16.msra.mxu0 0
      %1423 = vmatpush.bf16.msra.mxu0 %v1389
      %1424 = vmatmul.bf16.gmra.mxu0 %v1393
      %v1425 = vpop.f32.mrf.mxu0
      %v1426 = vadd.f32 %v1383, %v1425
      %v1427 = vpop.f32.mrf.mxu0
      %v1428 = vadd.f32 %v1383, %v1427
      %1429 = vmatmul.bf16.gmra.mxu0 %v1396
      %v1430 = vpop.f32.mrf.mxu0
      %v1431 = vadd.f32 %v1383, %v1430
      %v1432 = vpop.f32.mrf.mxu0
      %v1433 = vadd.f32 %v1383, %v1432
      %1434 = vmatmul.bf16.gmra.mxu0 %v1399
      %v1435 = vpop.f32.mrf.mxu0
      %v1436 = vadd.f32 %v1383, %v1435
      %v1437 = vpop.f32.mrf.mxu0
      %v1438 = vadd.f32 %v1383, %v1437
      %1439 = vmatmul.bf16.gmra.mxu0 %v1402
      %v1440 = vpop.f32.mrf.mxu0
      %v1441 = vadd.f32 %v1383, %v1440
      %v1442 = vpop.f32.mrf.mxu0
      %v1443 = vadd.f32 %v1383, %v1442
      %1444 = vmatmul.bf16.gmra.mxu0 %v1405
      %v1445 = vpop.f32.mrf.mxu0
      %v1446 = vadd.f32 %v1383, %v1445
      %v1447 = vpop.f32.mrf.mxu0
      %v1448 = vadd.f32 %v1383, %v1447
      %1449 = vmatmul.bf16.gmra.mxu0 %v1408
      %v1450 = vpop.f32.mrf.mxu0
      %v1451 = vadd.f32 %v1383, %v1450
      %v1452 = vpop.f32.mrf.mxu0
      %v1453 = vadd.f32 %v1383, %v1452
      %1454 = vmatmul.bf16.gmra.mxu0 %v1411
      %v1455 = vpop.f32.mrf.mxu0
      %v1456 = vadd.f32 %v1383, %v1455
      %v1457 = vpop.f32.mrf.mxu0
      %v1458 = vadd.f32 %v1383, %v1457
      %1459 = vmatmul.bf16.gmra.mxu0 %v1414
      %v1460 = vpop.f32.mrf.mxu0
      %v1461 = vadd.f32 %v1383, %v1460
      %v1462 = vpop.f32.mrf.mxu0
      %v1463 = vadd.f32 %v1383, %v1462
      %1464 = vdwg.mxu0
      %s1465 = sld [smem:[#allocation4]]
      %v1466 = vstv %s1465
      %v1467 = vmul.f32 %v1466, %v1426
      %v1468 = vmul.f32 %v1466, %v1428
      %v1469 = vmul.f32 %v1466, %v1431
      %v1470 = vmul.f32 %v1466, %v1433
      %v1471 = vmul.f32 %v1466, %v1436
      %v1472 = vmul.f32 %v1466, %v1438
      %v1473 = vmul.f32 %v1466, %v1441
      %v1474 = vmul.f32 %v1466, %v1443
      %v1475 = vmul.f32 %v1466, %v1446
      %v1476 = vmul.f32 %v1466, %v1448
      %v1477 = vmul.f32 %v1466, %v1451
      %v1478 = vmul.f32 %v1466, %v1453
      %v1479 = vmul.f32 %v1466, %v1456
      %v1480 = vmul.f32 %v1466, %v1458
      %v1481 = vmul.f32 %v1466, %v1461
      %v1482 = vmul.f32 %v1466, %v1463
      %v1483 = vadd.f32 %v633, %v1467
      %v1484 = vadd.f32 %v634, %v1468
      %v1485 = vadd.f32 %v635, %v1469
      %v1486 = vadd.f32 %v636, %v1470
      %v1487 = vadd.f32 %v637, %v1471
      %v1488 = vadd.f32 %v638, %v1472
      %v1489 = vadd.f32 %v639, %v1473
      %v1490 = vadd.f32 %v640, %v1474
      %v1491 = vadd.f32 %v641, %v1475
      %v1492 = vadd.f32 %v642, %v1476
      %v1493 = vadd.f32 %v643, %v1477
      %v1494 = vadd.f32 %v644, %v1478
      %v1495 = vadd.f32 %v645, %v1479
      %v1496 = vadd.f32 %v646, %v1480
      %v1497 = vadd.f32 %v647, %v1481
      %v1498 = vadd.f32 %v648, %v1482
      %1499 = vst.msk [vmem:[%s328] sm:$0xff] %vm677, %v1483
      %1500 = vst.msk [vmem:[%s328 + $0x8] sm:$0xff] %vm677, %v1484
      %1501 = vst.msk [vmem:[%s328 + $0x10] sm:$0xff] %vm677, %v1485
      %1502 = vst.msk [vmem:[%s328 + $0x18] sm:$0xff] %vm677, %v1486
      %1503 = vst.msk [vmem:[%s328 + $0x20] sm:$0xff] %vm677, %v1487
      %1504 = vst.msk [vmem:[%s328 + $0x28] sm:$0xff] %vm677, %v1488
      %1505 = vst.msk [vmem:[%s328 + $0x30] sm:$0xff] %vm677, %v1489
      %1506 = vst.msk [vmem:[%s328 + $0x38] sm:$0xff] %vm677, %v1490
      %1507 = vst.msk [vmem:[%s328 + $0x40] sm:$0xff] %vm677, %v1491
      %1508 = vst.msk [vmem:[%s328 + $0x48] sm:$0xff] %vm677, %v1492
      %1509 = vst.msk [vmem:[%s328 + $0x50] sm:$0xff] %vm677, %v1493
      %1510 = vst.msk [vmem:[%s328 + $0x58] sm:$0xff] %vm677, %v1494
      %1511 = vst.msk [vmem:[%s328 + $0x60] sm:$0xff] %vm677, %v1495
      %1512 = vst.msk [vmem:[%s328 + $0x68] sm:$0xff] %vm677, %v1496
      %1513 = vst.msk [vmem:[%s328 + $0x70] sm:$0xff] %vm677, %v1497
      %1514 = vst.msk [vmem:[%s328 + $0x78] sm:$0xff] %vm677, %v1498
      %s1515 = smul.u32 16, %s25
      %p1516 = scmp.lt.s32.totalorder %s24, 1
      %s1517 = scalar_select %p1516, %s24, 1
      %p1518 = scmp.lt.s32.totalorder %s1515, 31
      %s1519 = scalar_select %p1518, %s1515, 31
      %s1520 = smul.addr %s1517, 32
      %s1521 = sadd.s32 %s1519, %s1520
      %s1522 = smul.addr %s1521, 8
      %s1523 = scalar_lea.vmem %s8, %s1522
      // Predicated region
      $region57: #{tpu_custom_call.1} parent=51 // pred_check
        %p1524 = pneg %p225
      $region58: #{tpu_custom_call.1} parent=51 // pred_check_branch
        %1526 = sbr.rel (%p1524) target = $region60
      $region59: #{tpu_custom_call.1} parent=51 // pred_region
        %s1527 = smul.u32 16, %s25
      $region60: #{tpu_custom_call.1} parent=51 // pred_fallthru
        _
    $region52: #{tpu_custom_call.1} parent=5 // pred_fallthru
      _
    %p1528 = scmp.le.s32.totalorder 2, %s15
    // Predicated region
    $region61: #{tpu_custom_call.1} parent=5 // pred_check
      %p1529 = pneg %p1528
    $region62: #{tpu_custom_call.1} parent=5 // pred_check_branch
      %1531 = sbr.rel (%p1529) target = $region64
    $region63: #{tpu_custom_call.1} parent=5 // pred_region
      %s1532 = ssub.s32 %s15, 2
      // Predicated region
      $region65: #{tpu_custom_call.1} parent=63 // pred_check
        %p1533 = pneg %p231
      $region66: #{tpu_custom_call.1} parent=63 // pred_check_branch
        %1535 = sbr.rel (%p1533) target = $region68
      $region67: #{tpu_custom_call.1} parent=63 // pred_region
        %s1536 = smul.u32 16, %s27
        %p1537 = scmp.lt.s32.totalorder %s26, 1
        %s1538 = scalar_select %p1537, %s26, 1
        %p1539 = scmp.lt.s32.totalorder %s1536, 31
        %s1540 = scalar_select %p1539, %s1536, 31
        %s1541 = smul.addr %s1538, 32
        %s1542 = sadd.s32 %s1540, %s1541
        %s1543 = smul.addr %s1542, 8
        %s1544 = scalar_lea.vmem %s8, %s1543
      $region68: #{tpu_custom_call.1} parent=63 // pred_fallthru
        _
    $region64: #{tpu_custom_call.1} parent=5 // pred_fallthru
      _
  $region6: #{tpu_custom_call.1} parent=0 // loop_footer
    %s19 = sadd.s32 1, %s15
  $region7: #{tpu_custom_call.1} parent=0 // loop_footer_branch
    %14 = sbr.rel target = $region3
  $region8: #{tpu_custom_call.1} parent=0 // loop_exit
    _

</llo_original>
